<compile_context>
chip_gen: v7x
topology: tpu7x:2x2x1
jax: 0.10.0
libtpu: 0.0.40
codegen_flags: <defaults>
</compile_context>

<pallas_src>
import jax
import jax.numpy as jnp
import numpy as np
from jax.experimental import pallas as pl
from jax.experimental.pallas import tpu as pltpu


HIDDEN = 32     # hidden_size
VOCAB = 50      # input_size (embedding vocabulary)


def gru_seq_kernel(tokens_ref,            # SMEM: (seq,) int32 token ids (scalar prefetch)
                   emb_ref,               # VMEM: (V, H)  full embedding table (resident)
                   wih_ref,               # VMEM: (H, 3H) W_ih^T, gate order [r|z|n]
                   whh_ref,               # VMEM: (H, 3H) W_hh^T, gate order [r|z|n]
                   bcomb_ref,             # VMEM: (1, 3H) [b_ir+b_hr | b_iz+b_hz | b_in]
                   bhn_ref,               # VMEM: (1, H)  b_hn
                   h0_ref,                # VMEM: (1, H)  initial hidden state
                   out_ref,               # VMEM: (seq, H) hidden state at every step
                   x_scratch):            # VMEM scratch: (seq, H) gathered embeddings
    seq_len, H = out_ref.shape

    # 1) Gather the embedding row of every token into VMEM scratch (table is resident).
    for t in range(seq_len):
        tok = tokens_ref[t]
        x_scratch[pl.ds(t, 1), :] = emb_ref[pl.ds(tok, 1), :]

    # 2) Input-side gates for ALL steps in one batched MXU matmul (no dependence on h,
    #    so it is hoisted off the serial recurrence).
    gi = jnp.dot(x_scratch[...], wih_ref[...],
                 preferred_element_type=jnp.float32) + bcomb_ref[...]      # (seq, 3H)

    whh = whh_ref[...]
    b_hn = bhn_ref[...]

    # 3) Sequential recurrence; hidden state carried in vregs.
    h = h0_ref[...]                                                        # (1, H)
    hs = []
    for t in range(seq_len):
        gh = jnp.dot(h, whh, preferred_element_type=jnp.float32)           # (1, 3H)
        g = gi[t:t + 1, :]
        r = jax.nn.sigmoid(g[:, :H] + gh[:, :H])
        z = jax.nn.sigmoid(g[:, H:2 * H] + gh[:, H:2 * H])
        n = jnp.tanh(g[:, 2 * H:] + r * (gh[:, 2 * H:] + b_hn))
        h = (1.0 - z) * n + z * h
        hs.append(h)

    # 4) Single slab writeback at the end of the kernel.
    out_ref[...] = jnp.concatenate(hs, axis=0).astype(out_ref.dtype)


def init_params(key, vocab=VOCAB, hidden=HIDDEN):
    """PyTorch-layout parameters (shapes match nn.Embedding / nn.GRU, gate order r,z,n)."""
    k_emb, k_wih, k_whh, k_bih, k_bhh = jax.random.split(key, 5)
    bound = 1.0 / np.sqrt(hidden)
    return dict(
        embedding=jax.random.normal(k_emb, (vocab, hidden), jnp.float32),
        w_ih=jax.random.uniform(k_wih, (3 * hidden, hidden), jnp.float32, -bound, bound),
        w_hh=jax.random.uniform(k_whh, (3 * hidden, hidden), jnp.float32, -bound, bound),
        b_ih=jax.random.uniform(k_bih, (3 * hidden,), jnp.float32, -bound, bound),
        b_hh=jax.random.uniform(k_bhh, (3 * hidden,), jnp.float32, -bound, bound),
    )


def pack_params(params):
    """Convert PyTorch-layout params to the fused kernel layout."""
    b_ih, b_hh = params["b_ih"], params["b_hh"]
    H = params["embedding"].shape[1]
    b_comb = jnp.concatenate([b_ih[:2 * H] + b_hh[:2 * H], b_ih[2 * H:]]).reshape(1, 3 * H)
    return dict(
        emb=params["embedding"],                        # (V, H), VMEM-resident in kernel
        w_ih_t=params["w_ih"].T,                        # (H, 3H)
        w_hh_t=params["w_hh"].T,                        # (H, 3H)
        b_comb=b_comb,                                  # (1, 3H)
        b_hn=b_hh[2 * H:].reshape(1, H),                # (1, H)
    )


def encoder_rnn_encode(tokens, hidden0, params, packed=None):
    """Run the encoder over a whole token sequence in one pallas_call / one grid step.

    tokens : (seq,) int32
    hidden0: (1, 1, H)
    returns: outputs (seq, 1, H), final hidden (1, 1, H)
    """
    V, H = params["embedding"].shape
    if packed is None:
        packed = pack_params(params)
    seq_len = int(tokens.shape[0])
    h0 = hidden0.reshape(1, H).astype(jnp.float32)

    grid_spec = pltpu.PrefetchScalarGridSpec(
        num_scalar_prefetch=1,
        grid=(1,),                                       # whole sequence in one step
        in_specs=[
            pl.BlockSpec((V, H), lambda i, toks: (0, 0)),         # embedding table
            pl.BlockSpec((H, 3 * H), lambda i, toks: (0, 0)),     # W_ih^T
            pl.BlockSpec((H, 3 * H), lambda i, toks: (0, 0)),     # W_hh^T
            pl.BlockSpec((1, 3 * H), lambda i, toks: (0, 0)),     # fused biases
            pl.BlockSpec((1, H), lambda i, toks: (0, 0)),         # b_hn
            pl.BlockSpec((1, H), lambda i, toks: (0, 0)),         # h0
        ],
        out_specs=pl.BlockSpec((seq_len, H), lambda i, toks: (0, 0)),
        scratch_shapes=[pltpu.VMEM((seq_len, H), jnp.float32)],
    )

    outs = pl.pallas_call(
        gru_seq_kernel,
        out_shape=jax.ShapeDtypeStruct((seq_len, H), jnp.float32),
        grid_spec=grid_spec,
        compiler_params=pltpu.CompilerParams(
            dimension_semantics=("arbitrary",)),         # recurrence: strictly sequential
    )(tokens.astype(jnp.int32), packed["emb"], packed["w_ih_t"], packed["w_hh_t"],
      packed["b_comb"], packed["b_hn"], h0)

    outputs = outs.reshape(seq_len, 1, H)
    hidden = outs[-1].reshape(1, 1, H)                   # output == hidden for 1-layer GRU
    return outputs, hidden


def encoder_rnn_forward(token, hidden, params, packed=None):
    """Exact module forward: one token -> (output (1,1,H), hidden (1,1,H))."""
    H = params["embedding"].shape[1]
    tokens = jnp.reshape(jnp.asarray(token, jnp.int32), (1,))
    outputs, new_hidden = encoder_rnn_encode(tokens, hidden, params, packed)
    return outputs.reshape(1, 1, H), new_hidden


def _reference_encode(tokens, hidden0, params):
    """Pure-JAX reference with PyTorch GRU semantics (gate order r,z,n)."""
    H = params["embedding"].shape[1]
    w_ih, w_hh = params["w_ih"], params["w_hh"]
    b_ih, b_hh = params["b_ih"], params["b_hh"]
    h = hidden0.reshape(1, H)
    outs = []
    for tok in np.asarray(tokens):
        x = params["embedding"][int(tok)].reshape(1, H)
        gi = x @ w_ih.T + b_ih
        gh = h @ w_hh.T + b_hh
        i_r, i_z, i_n = gi[:, :H], gi[:, H:2 * H], gi[:, 2 * H:]
        h_r, h_z, h_n = gh[:, :H], gh[:, H:2 * H], gh[:, 2 * H:]
        r = jax.nn.sigmoid(i_r + h_r)
        z = jax.nn.sigmoid(i_z + h_z)
        n = jnp.tanh(i_n + r * h_n)
        h = (1.0 - z) * n + z * h
        outs.append(h)
    outs = jnp.stack(outs, axis=0).reshape(len(outs), 1, H)
    return outs, h.reshape(1, 1, H)


if __name__ == "__main__":
    key = jax.random.PRNGKey(0)
    k_params, k_tok, k_hid = jax.random.split(key, 3)

    params = init_params(k_params)
    packed = pack_params(params)

    SEQ = 8
    tokens = jax.random.randint(k_tok, (SEQ,), 0, VOCAB, dtype=jnp.int32)
    # initHidden() is zeros(1,1,H); use a random hidden to exercise all gates.
    hidden0 = jax.random.normal(k_hid, (1, 1, HIDDEN), jnp.float32)

    # Full-sequence encode (one kernel launch, one grid step, for all SEQ tokens).
    outs, hT = encoder_rnn_encode(tokens, hidden0, params, packed)
    outs = jax.block_until_ready(outs)
    hT = jax.block_until_ready(hT)

    ref_outs, ref_hT = _reference_encode(tokens, hidden0, params)
    np.testing.assert_allclose(np.asarray(outs), np.asarray(ref_outs), rtol=1e-5, atol=1e-5)
    np.testing.assert_allclose(np.asarray(hT), np.asarray(ref_hT), rtol=1e-5, atol=1e-5)
    assert outs.shape == (SEQ, 1, HIDDEN) and hT.shape == (1, 1, HIDDEN)

    # Single-step forward with the exact module signature / shapes.
    out1, h1 = encoder_rnn_forward(tokens[0], hidden0, params, packed)
    out1 = jax.block_until_ready(out1)
    h1 = jax.block_until_ready(h1)
    ref_out1, ref_h1 = _reference_encode(tokens[:1], hidden0, params)
    np.testing.assert_allclose(np.asarray(out1), np.asarray(ref_out1.reshape(1, 1, HIDDEN)),
                               rtol=1e-5, atol=1e-5)
    np.testing.assert_allclose(np.asarray(h1), np.asarray(ref_h1), rtol=1e-5, atol=1e-5)
    assert out1.shape == (1, 1, HIDDEN) and h1.shape == (1, 1, HIDDEN)

    print("KERNEL_OK")
</pallas_src>

<mosaic_0001>
module attributes {stable_mosaic.version = 11 : i64} {
  func.func @gru_seq_kernel(%arg0: i32, %arg1: memref<8xi32, #tpu.memory_space<smem>>, %arg2: memref<50x32xf32, #tpu.memory_space<vmem>>, %arg3: memref<32x96xf32, #tpu.memory_space<vmem>>, %arg4: memref<32x96xf32, #tpu.memory_space<vmem>>, %arg5: memref<1x96xf32, #tpu.memory_space<vmem>>, %arg6: memref<1x32xf32, #tpu.memory_space<vmem>>, %arg7: memref<1x32xf32, #tpu.memory_space<vmem>>, %arg8: memref<8x32xf32, #tpu.memory_space<vmem>>, %arg9: memref<8x32xf32, #tpu.memory_space<vmem>>) attributes {dimension_semantics = [#tpu.dimension_semantics<arbitrary>], iteration_bounds = array<i64: 1>, scalar_prefetch = 1 : i64, scratch_operands = 1 : i64, tpu.core_type = #tpu.core_type<tc>, window_params = [{pipeline_mode = #tpu.pipeline_mode<synchronous>, transform_indices = @transform_0, window_bounds = array<i64: 50, 32>}, {pipeline_mode = #tpu.pipeline_mode<synchronous>, transform_indices = @transform_1, window_bounds = array<i64: 32, 96>}, {pipeline_mode = #tpu.pipeline_mode<synchronous>, transform_indices = @transform_2, window_bounds = array<i64: 32, 96>}, {pipeline_mode = #tpu.pipeline_mode<synchronous>, transform_indices = @transform_3, window_bounds = array<i64: 1, 96>}, {pipeline_mode = #tpu.pipeline_mode<synchronous>, transform_indices = @transform_4, window_bounds = array<i64: 1, 32>}, {pipeline_mode = #tpu.pipeline_mode<synchronous>, transform_indices = @transform_5, window_bounds = array<i64: 1, 32>}, {pipeline_mode = #tpu.pipeline_mode<synchronous>, transform_indices = @transform_6, window_bounds = array<i64: 8, 32>}]} {
    %c0 = arith.constant 0 : index
    %0 = memref.load %arg1[%c0] : memref<8xi32, #tpu.memory_space<smem>>
    %1 = arith.index_cast %0 : i32 to index
    %c0_0 = arith.constant 0 : index
    %2 = vector.load %arg2[%1, %c0_0] : memref<50x32xf32, #tpu.memory_space<vmem>>, vector<1x32xf32>
    %c0_1 = arith.constant 0 : index
    %c0_2 = arith.constant 0 : index
    %3 = vector.load %arg9[%c0_1, %c0_2] : memref<8x32xf32, #tpu.memory_space<vmem>>, vector<1x32xf32>
    tpu.vector_store %arg9[%c0_1, %c0_2], %2 {strides = array<i32>} : memref<8x32xf32, #tpu.memory_space<vmem>>, vector<1x32xf32>,
    %c1 = arith.constant 1 : index
    %4 = memref.load %arg1[%c1] : memref<8xi32, #tpu.memory_space<smem>>
    %5 = arith.index_cast %4 : i32 to index
    %c0_3 = arith.constant 0 : index
    %6 = vector.load %arg2[%5, %c0_3] : memref<50x32xf32, #tpu.memory_space<vmem>>, vector<1x32xf32>
    %c1_4 = arith.constant 1 : index
    %c0_5 = arith.constant 0 : index
    %7 = vector.load %arg9[%c1_4, %c0_5] : memref<8x32xf32, #tpu.memory_space<vmem>>, vector<1x32xf32>
    tpu.vector_store %arg9[%c1_4, %c0_5], %6 {strides = array<i32>} : memref<8x32xf32, #tpu.memory_space<vmem>>, vector<1x32xf32>,
    %c2 = arith.constant 2 : index
    %8 = memref.load %arg1[%c2] : memref<8xi32, #tpu.memory_space<smem>>
    %9 = arith.index_cast %8 : i32 to index
    %c0_6 = arith.constant 0 : index
    %10 = vector.load %arg2[%9, %c0_6] : memref<50x32xf32, #tpu.memory_space<vmem>>, vector<1x32xf32>
    %c2_7 = arith.constant 2 : index
    %c0_8 = arith.constant 0 : index
    %11 = vector.load %arg9[%c2_7, %c0_8] : memref<8x32xf32, #tpu.memory_space<vmem>>, vector<1x32xf32>
    tpu.vector_store %arg9[%c2_7, %c0_8], %10 {strides = array<i32>} : memref<8x32xf32, #tpu.memory_space<vmem>>, vector<1x32xf32>,
    %c3 = arith.constant 3 : index
    %12 = memref.load %arg1[%c3] : memref<8xi32, #tpu.memory_space<smem>>
    %13 = arith.index_cast %12 : i32 to index
    %c0_9 = arith.constant 0 : index
    %14 = vector.load %arg2[%13, %c0_9] : memref<50x32xf32, #tpu.memory_space<vmem>>, vector<1x32xf32>
    %c3_10 = arith.constant 3 : index
    %c0_11 = arith.constant 0 : index
    %15 = vector.load %arg9[%c3_10, %c0_11] : memref<8x32xf32, #tpu.memory_space<vmem>>, vector<1x32xf32>
    tpu.vector_store %arg9[%c3_10, %c0_11], %14 {strides = array<i32>} : memref<8x32xf32, #tpu.memory_space<vmem>>, vector<1x32xf32>,
    %c4 = arith.constant 4 : index
    %16 = memref.load %arg1[%c4] : memref<8xi32, #tpu.memory_space<smem>>
    %17 = arith.index_cast %16 : i32 to index
    %c0_12 = arith.constant 0 : index
    %18 = vector.load %arg2[%17, %c0_12] : memref<50x32xf32, #tpu.memory_space<vmem>>, vector<1x32xf32>
    %c4_13 = arith.constant 4 : index
    %c0_14 = arith.constant 0 : index
    %19 = vector.load %arg9[%c4_13, %c0_14] : memref<8x32xf32, #tpu.memory_space<vmem>>, vector<1x32xf32>
    tpu.vector_store %arg9[%c4_13, %c0_14], %18 {strides = array<i32>} : memref<8x32xf32, #tpu.memory_space<vmem>>, vector<1x32xf32>,
    %c5 = arith.constant 5 : index
    %20 = memref.load %arg1[%c5] : memref<8xi32, #tpu.memory_space<smem>>
    %21 = arith.index_cast %20 : i32 to index
    %c0_15 = arith.constant 0 : index
    %22 = vector.load %arg2[%21, %c0_15] : memref<50x32xf32, #tpu.memory_space<vmem>>, vector<1x32xf32>
    %c5_16 = arith.constant 5 : index
    %c0_17 = arith.constant 0 : index
    %23 = vector.load %arg9[%c5_16, %c0_17] : memref<8x32xf32, #tpu.memory_space<vmem>>, vector<1x32xf32>
    tpu.vector_store %arg9[%c5_16, %c0_17], %22 {strides = array<i32>} : memref<8x32xf32, #tpu.memory_space<vmem>>, vector<1x32xf32>,
    %c6 = arith.constant 6 : index
    %24 = memref.load %arg1[%c6] : memref<8xi32, #tpu.memory_space<smem>>
    %25 = arith.index_cast %24 : i32 to index
    %c0_18 = arith.constant 0 : index
    %26 = vector.load %arg2[%25, %c0_18] : memref<50x32xf32, #tpu.memory_space<vmem>>, vector<1x32xf32>
    %c6_19 = arith.constant 6 : index
    %c0_20 = arith.constant 0 : index
    %27 = vector.load %arg9[%c6_19, %c0_20] : memref<8x32xf32, #tpu.memory_space<vmem>>, vector<1x32xf32>
    tpu.vector_store %arg9[%c6_19, %c0_20], %26 {strides = array<i32>} : memref<8x32xf32, #tpu.memory_space<vmem>>, vector<1x32xf32>,
    %c7 = arith.constant 7 : index
    %28 = memref.load %arg1[%c7] : memref<8xi32, #tpu.memory_space<smem>>
    %29 = arith.index_cast %28 : i32 to index
    %c0_21 = arith.constant 0 : index
    %30 = vector.load %arg2[%29, %c0_21] : memref<50x32xf32, #tpu.memory_space<vmem>>, vector<1x32xf32>
    %c7_22 = arith.constant 7 : index
    %c0_23 = arith.constant 0 : index
    %31 = vector.load %arg9[%c7_22, %c0_23] : memref<8x32xf32, #tpu.memory_space<vmem>>, vector<1x32xf32>
    tpu.vector_store %arg9[%c7_22, %c0_23], %30 {strides = array<i32>} : memref<8x32xf32, #tpu.memory_space<vmem>>, vector<1x32xf32>,
    %c0_24 = arith.constant 0 : index
    %c0_25 = arith.constant 0 : index
    %32 = vector.load %arg9[%c0_24, %c0_25] : memref<8x32xf32, #tpu.memory_space<vmem>>, vector<8x32xf32>
    %c0_26 = arith.constant 0 : index
    %c0_27 = arith.constant 0 : index
    %33 = vector.load %arg3[%c0_26, %c0_27] : memref<32x96xf32, #tpu.memory_space<vmem>>, vector<32x96xf32>
    %cst = arith.constant dense<0.000000e+00> : vector<8x96xf32>
    %34 = tpu.matmul %32, %33, %cst {dimension_numbers = #tpu.dot_dimension_numbers<[1], [0], [0], [1], [0, 0, 1, 1], [], []>} : vector<8x32xf32>, vector<32x96xf32>, vector<8x96xf32> -> vector<8x96xf32>
    %c0_28 = arith.constant 0 : index
    %c0_29 = arith.constant 0 : index
    %35 = vector.load %arg5[%c0_28, %c0_29] : memref<1x96xf32, #tpu.memory_space<vmem>>, vector<1x96xf32>
    %36 = vector.broadcast %35 : vector<1x96xf32> to vector<8x96xf32>
    %37 = arith.addf %34, %36 : vector<8x96xf32>
    %c0_30 = arith.constant 0 : index
    %c0_31 = arith.constant 0 : index
    %38 = vector.load %arg4[%c0_30, %c0_31] : memref<32x96xf32, #tpu.memory_space<vmem>>, vector<32x96xf32>
    %c0_32 = arith.constant 0 : index
    %c0_33 = arith.constant 0 : index
    %39 = vector.load %arg6[%c0_32, %c0_33] : memref<1x32xf32, #tpu.memory_space<vmem>>, vector<1x32xf32>
    %c0_34 = arith.constant 0 : index
    %c0_35 = arith.constant 0 : index
    %40 = vector.load %arg7[%c0_34, %c0_35] : memref<1x32xf32, #tpu.memory_space<vmem>>, vector<1x32xf32>
    %cst_36 = arith.constant dense<0.000000e+00> : vector<1x96xf32>
    %41 = tpu.matmul %40, %38, %cst_36 {dimension_numbers = #tpu.dot_dimension_numbers<[1], [0], [0], [1], [0, 0, 1, 1], [], []>} : vector<1x32xf32>, vector<32x96xf32>, vector<1x96xf32> -> vector<1x96xf32>
    %42 = vector.extract_strided_slice %37 {offsets = [0, 0], sizes = [1, 96], strides = [1, 1]} : vector<8x96xf32> to vector<1x96xf32>
    %43 = vector.extract_strided_slice %42 {offsets = [0, 0], sizes = [1, 32], strides = [1, 1]} : vector<1x96xf32> to vector<1x32xf32>
    %44 = vector.extract_strided_slice %41 {offsets = [0, 0], sizes = [1, 32], strides = [1, 1]} : vector<1x96xf32> to vector<1x32xf32>
    %45 = arith.addf %43, %44 : vector<1x32xf32>
    %46 = arith.negf %45 : vector<1x32xf32>
    %47 = math.exp %46 : vector<1x32xf32>
    %cst_37 = arith.constant 1.000000e+00 : f32
    %48 = vector.broadcast %cst_37 : f32 to vector<1x32xf32>
    %49 = arith.addf %48, %47 : vector<1x32xf32>
    %50 = arith.divf %48, %49 : vector<1x32xf32>
    %51 = vector.extract_strided_slice %42 {offsets = [0, 32], sizes = [1, 32], strides = [1, 1]} : vector<1x96xf32> to vector<1x32xf32>
    %52 = vector.extract_strided_slice %41 {offsets = [0, 32], sizes = [1, 32], strides = [1, 1]} : vector<1x96xf32> to vector<1x32xf32>
    %53 = arith.addf %51, %52 : vector<1x32xf32>
    %54 = arith.negf %53 : vector<1x32xf32>
    %55 = math.exp %54 : vector<1x32xf32>
    %cst_38 = arith.constant 1.000000e+00 : f32
    %56 = vector.broadcast %cst_38 : f32 to vector<1x32xf32>
    %57 = arith.addf %56, %55 : vector<1x32xf32>
    %58 = arith.divf %56, %57 : vector<1x32xf32>
    %59 = vector.extract_strided_slice %42 {offsets = [0, 64], sizes = [1, 32], strides = [1, 1]} : vector<1x96xf32> to vector<1x32xf32>
    %60 = vector.extract_strided_slice %41 {offsets = [0, 64], sizes = [1, 32], strides = [1, 1]} : vector<1x96xf32> to vector<1x32xf32>
    %61 = arith.addf %60, %39 : vector<1x32xf32>
    %62 = arith.mulf %50, %61 : vector<1x32xf32>
    %63 = arith.addf %59, %62 : vector<1x32xf32>
    %64 = math.tanh %63 : vector<1x32xf32>
    %cst_39 = arith.constant 1.000000e+00 : f32
    %65 = vector.broadcast %cst_39 : f32 to vector<1x32xf32>
    %66 = arith.subf %65, %58 : vector<1x32xf32>
    %67 = arith.mulf %66, %64 : vector<1x32xf32>
    %68 = arith.mulf %58, %40 : vector<1x32xf32>
    %69 = arith.addf %67, %68 : vector<1x32xf32>
    %cst_40 = arith.constant dense<0.000000e+00> : vector<1x96xf32>
    %70 = tpu.matmul %69, %38, %cst_40 {dimension_numbers = #tpu.dot_dimension_numbers<[1], [0], [0], [1], [0, 0, 1, 1], [], []>} : vector<1x32xf32>, vector<32x96xf32>, vector<1x96xf32> -> vector<1x96xf32>
    %71 = vector.extract_strided_slice %37 {offsets = [1, 0], sizes = [1, 96], strides = [1, 1]} : vector<8x96xf32> to vector<1x96xf32>
    %72 = vector.extract_strided_slice %71 {offsets = [0, 0], sizes = [1, 32], strides = [1, 1]} : vector<1x96xf32> to vector<1x32xf32>
    %73 = vector.extract_strided_slice %70 {offsets = [0, 0], sizes = [1, 32], strides = [1, 1]} : vector<1x96xf32> to vector<1x32xf32>
    %74 = arith.addf %72, %73 : vector<1x32xf32>
    %75 = arith.negf %74 : vector<1x32xf32>
    %76 = math.exp %75 : vector<1x32xf32>
    %cst_41 = arith.constant 1.000000e+00 : f32
    %77 = vector.broadcast %cst_41 : f32 to vector<1x32xf32>
    %78 = arith.addf %77, %76 : vector<1x32xf32>
    %79 = arith.divf %77, %78 : vector<1x32xf32>
    %80 = vector.extract_strided_slice %71 {offsets = [0, 32], sizes = [1, 32], strides = [1, 1]} : vector<1x96xf32> to vector<1x32xf32>
    %81 = vector.extract_strided_slice %70 {offsets = [0, 32], sizes = [1, 32], strides = [1, 1]} : vector<1x96xf32> to vector<1x32xf32>
    %82 = arith.addf %80, %81 : vector<1x32xf32>
    %83 = arith.negf %82 : vector<1x32xf32>
    %84 = math.exp %83 : vector<1x32xf32>
    %cst_42 = arith.constant 1.000000e+00 : f32
    %85 = vector.broadcast %cst_42 : f32 to vector<1x32xf32>
    %86 = arith.addf %85, %84 : vector<1x32xf32>
    %87 = arith.divf %85, %86 : vector<1x32xf32>
    %88 = vector.extract_strided_slice %71 {offsets = [0, 64], sizes = [1, 32], strides = [1, 1]} : vector<1x96xf32> to vector<1x32xf32>
    %89 = vector.extract_strided_slice %70 {offsets = [0, 64], sizes = [1, 32], strides = [1, 1]} : vector<1x96xf32> to vector<1x32xf32>
    %90 = arith.addf %89, %39 : vector<1x32xf32>
    %91 = arith.mulf %79, %90 : vector<1x32xf32>
    %92 = arith.addf %88, %91 : vector<1x32xf32>
    %93 = math.tanh %92 : vector<1x32xf32>
    %cst_43 = arith.constant 1.000000e+00 : f32
    %94 = vector.broadcast %cst_43 : f32 to vector<1x32xf32>
    %95 = arith.subf %94, %87 : vector<1x32xf32>
    %96 = arith.mulf %95, %93 : vector<1x32xf32>
    %97 = arith.mulf %87, %69 : vector<1x32xf32>
    %98 = arith.addf %96, %97 : vector<1x32xf32>
    %cst_44 = arith.constant dense<0.000000e+00> : vector<1x96xf32>
    %99 = tpu.matmul %98, %38, %cst_44 {dimension_numbers = #tpu.dot_dimension_numbers<[1], [0], [0], [1], [0, 0, 1, 1], [], []>} : vector<1x32xf32>, vector<32x96xf32>, vector<1x96xf32> -> vector<1x96xf32>
    %100 = vector.extract_strided_slice %37 {offsets = [2, 0], sizes = [1, 96], strides = [1, 1]} : vector<8x96xf32> to vector<1x96xf32>
    %101 = vector.extract_strided_slice %100 {offsets = [0, 0], sizes = [1, 32], strides = [1, 1]} : vector<1x96xf32> to vector<1x32xf32>
    %102 = vector.extract_strided_slice %99 {offsets = [0, 0], sizes = [1, 32], strides = [1, 1]} : vector<1x96xf32> to vector<1x32xf32>
    %103 = arith.addf %101, %102 : vector<1x32xf32>
    %104 = arith.negf %103 : vector<1x32xf32>
    %105 = math.exp %104 : vector<1x32xf32>
    %cst_45 = arith.constant 1.000000e+00 : f32
    %106 = vector.broadcast %cst_45 : f32 to vector<1x32xf32>
    %107 = arith.addf %106, %105 : vector<1x32xf32>
    %108 = arith.divf %106, %107 : vector<1x32xf32>
    %109 = vector.extract_strided_slice %100 {offsets = [0, 32], sizes = [1, 32], strides = [1, 1]} : vector<1x96xf32> to vector<1x32xf32>
    %110 = vector.extract_strided_slice %99 {offsets = [0, 32], sizes = [1, 32], strides = [1, 1]} : vector<1x96xf32> to vector<1x32xf32>
    %111 = arith.addf %109, %110 : vector<1x32xf32>
    %112 = arith.negf %111 : vector<1x32xf32>
    %113 = math.exp %112 : vector<1x32xf32>
    %cst_46 = arith.constant 1.000000e+00 : f32
    %114 = vector.broadcast %cst_46 : f32 to vector<1x32xf32>
    %115 = arith.addf %114, %113 : vector<1x32xf32>
    %116 = arith.divf %114, %115 : vector<1x32xf32>
    %117 = vector.extract_strided_slice %100 {offsets = [0, 64], sizes = [1, 32], strides = [1, 1]} : vector<1x96xf32> to vector<1x32xf32>
    %118 = vector.extract_strided_slice %99 {offsets = [0, 64], sizes = [1, 32], strides = [1, 1]} : vector<1x96xf32> to vector<1x32xf32>
    %119 = arith.addf %118, %39 : vector<1x32xf32>
    %120 = arith.mulf %108, %119 : vector<1x32xf32>
    %121 = arith.addf %117, %120 : vector<1x32xf32>
    %122 = math.tanh %121 : vector<1x32xf32>
    %cst_47 = arith.constant 1.000000e+00 : f32
    %123 = vector.broadcast %cst_47 : f32 to vector<1x32xf32>
    %124 = arith.subf %123, %116 : vector<1x32xf32>
    %125 = arith.mulf %124, %122 : vector<1x32xf32>
    %126 = arith.mulf %116, %98 : vector<1x32xf32>
    %127 = arith.addf %125, %126 : vector<1x32xf32>
    %cst_48 = arith.constant dense<0.000000e+00> : vector<1x96xf32>
    %128 = tpu.matmul %127, %38, %cst_48 {dimension_numbers = #tpu.dot_dimension_numbers<[1], [0], [0], [1], [0, 0, 1, 1], [], []>} : vector<1x32xf32>, vector<32x96xf32>, vector<1x96xf32> -> vector<1x96xf32>
    %129 = vector.extract_strided_slice %37 {offsets = [3, 0], sizes = [1, 96], strides = [1, 1]} : vector<8x96xf32> to vector<1x96xf32>
    %130 = vector.extract_strided_slice %129 {offsets = [0, 0], sizes = [1, 32], strides = [1, 1]} : vector<1x96xf32> to vector<1x32xf32>
    %131 = vector.extract_strided_slice %128 {offsets = [0, 0], sizes = [1, 32], strides = [1, 1]} : vector<1x96xf32> to vector<1x32xf32>
    %132 = arith.addf %130, %131 : vector<1x32xf32>
    %133 = arith.negf %132 : vector<1x32xf32>
    %134 = math.exp %133 : vector<1x32xf32>
    %cst_49 = arith.constant 1.000000e+00 : f32
    %135 = vector.broadcast %cst_49 : f32 to vector<1x32xf32>
    %136 = arith.addf %135, %134 : vector<1x32xf32>
    %137 = arith.divf %135, %136 : vector<1x32xf32>
    %138 = vector.extract_strided_slice %129 {offsets = [0, 32], sizes = [1, 32], strides = [1, 1]} : vector<1x96xf32> to vector<1x32xf32>
    %139 = vector.extract_strided_slice %128 {offsets = [0, 32], sizes = [1, 32], strides = [1, 1]} : vector<1x96xf32> to vector<1x32xf32>
    %140 = arith.addf %138, %139 : vector<1x32xf32>
    %141 = arith.negf %140 : vector<1x32xf32>
    %142 = math.exp %141 : vector<1x32xf32>
    %cst_50 = arith.constant 1.000000e+00 : f32
    %143 = vector.broadcast %cst_50 : f32 to vector<1x32xf32>
    %144 = arith.addf %143, %142 : vector<1x32xf32>
    %145 = arith.divf %143, %144 : vector<1x32xf32>
    %146 = vector.extract_strided_slice %129 {offsets = [0, 64], sizes = [1, 32], strides = [1, 1]} : vector<1x96xf32> to vector<1x32xf32>
    %147 = vector.extract_strided_slice %128 {offsets = [0, 64], sizes = [1, 32], strides = [1, 1]} : vector<1x96xf32> to vector<1x32xf32>
    %148 = arith.addf %147, %39 : vector<1x32xf32>
    %149 = arith.mulf %137, %148 : vector<1x32xf32>
    %150 = arith.addf %146, %149 : vector<1x32xf32>
    %151 = math.tanh %150 : vector<1x32xf32>
    %cst_51 = arith.constant 1.000000e+00 : f32
    %152 = vector.broadcast %cst_51 : f32 to vector<1x32xf32>
    %153 = arith.subf %152, %145 : vector<1x32xf32>
    %154 = arith.mulf %153, %151 : vector<1x32xf32>
    %155 = arith.mulf %145, %127 : vector<1x32xf32>
    %156 = arith.addf %154, %155 : vector<1x32xf32>
    %cst_52 = arith.constant dense<0.000000e+00> : vector<1x96xf32>
    %157 = tpu.matmul %156, %38, %cst_52 {dimension_numbers = #tpu.dot_dimension_numbers<[1], [0], [0], [1], [0, 0, 1, 1], [], []>} : vector<1x32xf32>, vector<32x96xf32>, vector<1x96xf32> -> vector<1x96xf32>
    %158 = vector.extract_strided_slice %37 {offsets = [4, 0], sizes = [1, 96], strides = [1, 1]} : vector<8x96xf32> to vector<1x96xf32>
    %159 = vector.extract_strided_slice %158 {offsets = [0, 0], sizes = [1, 32], strides = [1, 1]} : vector<1x96xf32> to vector<1x32xf32>
    %160 = vector.extract_strided_slice %157 {offsets = [0, 0], sizes = [1, 32], strides = [1, 1]} : vector<1x96xf32> to vector<1x32xf32>
    %161 = arith.addf %159, %160 : vector<1x32xf32>
    %162 = arith.negf %161 : vector<1x32xf32>
    %163 = math.exp %162 : vector<1x32xf32>
    %cst_53 = arith.constant 1.000000e+00 : f32
    %164 = vector.broadcast %cst_53 : f32 to vector<1x32xf32>
    %165 = arith.addf %164, %163 : vector<1x32xf32>
    %166 = arith.divf %164, %165 : vector<1x32xf32>
    %167 = vector.extract_strided_slice %158 {offsets = [0, 32], sizes = [1, 32], strides = [1, 1]} : vector<1x96xf32> to vector<1x32xf32>
    %168 = vector.extract_strided_slice %157 {offsets = [0, 32], sizes = [1, 32], strides = [1, 1]} : vector<1x96xf32> to vector<1x32xf32>
    %169 = arith.addf %167, %168 : vector<1x32xf32>
    %170 = arith.negf %169 : vector<1x32xf32>
    %171 = math.exp %170 : vector<1x32xf32>
    %cst_54 = arith.constant 1.000000e+00 : f32
    %172 = vector.broadcast %cst_54 : f32 to vector<1x32xf32>
    %173 = arith.addf %172, %171 : vector<1x32xf32>
    %174 = arith.divf %172, %173 : vector<1x32xf32>
    %175 = vector.extract_strided_slice %158 {offsets = [0, 64], sizes = [1, 32], strides = [1, 1]} : vector<1x96xf32> to vector<1x32xf32>
    %176 = vector.extract_strided_slice %157 {offsets = [0, 64], sizes = [1, 32], strides = [1, 1]} : vector<1x96xf32> to vector<1x32xf32>
    %177 = arith.addf %176, %39 : vector<1x32xf32>
    %178 = arith.mulf %166, %177 : vector<1x32xf32>
    %179 = arith.addf %175, %178 : vector<1x32xf32>
    %180 = math.tanh %179 : vector<1x32xf32>
    %cst_55 = arith.constant 1.000000e+00 : f32
    %181 = vector.broadcast %cst_55 : f32 to vector<1x32xf32>
    %182 = arith.subf %181, %174 : vector<1x32xf32>
    %183 = arith.mulf %182, %180 : vector<1x32xf32>
    %184 = arith.mulf %174, %156 : vector<1x32xf32>
    %185 = arith.addf %183, %184 : vector<1x32xf32>
    %cst_56 = arith.constant dense<0.000000e+00> : vector<1x96xf32>
    %186 = tpu.matmul %185, %38, %cst_56 {dimension_numbers = #tpu.dot_dimension_numbers<[1], [0], [0], [1], [0, 0, 1, 1], [], []>} : vector<1x32xf32>, vector<32x96xf32>, vector<1x96xf32> -> vector<1x96xf32>
    %187 = vector.extract_strided_slice %37 {offsets = [5, 0], sizes = [1, 96], strides = [1, 1]} : vector<8x96xf32> to vector<1x96xf32>
    %188 = vector.extract_strided_slice %187 {offsets = [0, 0], sizes = [1, 32], strides = [1, 1]} : vector<1x96xf32> to vector<1x32xf32>
    %189 = vector.extract_strided_slice %186 {offsets = [0, 0], sizes = [1, 32], strides = [1, 1]} : vector<1x96xf32> to vector<1x32xf32>
    %190 = arith.addf %188, %189 : vector<1x32xf32>
    %191 = arith.negf %190 : vector<1x32xf32>
    %192 = math.exp %191 : vector<1x32xf32>
    %cst_57 = arith.constant 1.000000e+00 : f32
    %193 = vector.broadcast %cst_57 : f32 to vector<1x32xf32>
    %194 = arith.addf %193, %192 : vector<1x32xf32>
    %195 = arith.divf %193, %194 : vector<1x32xf32>
    %196 = vector.extract_strided_slice %187 {offsets = [0, 32], sizes = [1, 32], strides = [1, 1]} : vector<1x96xf32> to vector<1x32xf32>
    %197 = vector.extract_strided_slice %186 {offsets = [0, 32], sizes = [1, 32], strides = [1, 1]} : vector<1x96xf32> to vector<1x32xf32>
    %198 = arith.addf %196, %197 : vector<1x32xf32>
    %199 = arith.negf %198 : vector<1x32xf32>
    %200 = math.exp %199 : vector<1x32xf32>
    %cst_58 = arith.constant 1.000000e+00 : f32
    %201 = vector.broadcast %cst_58 : f32 to vector<1x32xf32>
    %202 = arith.addf %201, %200 : vector<1x32xf32>
    %203 = arith.divf %201, %202 : vector<1x32xf32>
    %204 = vector.extract_strided_slice %187 {offsets = [0, 64], sizes = [1, 32], strides = [1, 1]} : vector<1x96xf32> to vector<1x32xf32>
    %205 = vector.extract_strided_slice %186 {offsets = [0, 64], sizes = [1, 32], strides = [1, 1]} : vector<1x96xf32> to vector<1x32xf32>
    %206 = arith.addf %205, %39 : vector<1x32xf32>
    %207 = arith.mulf %195, %206 : vector<1x32xf32>
    %208 = arith.addf %204, %207 : vector<1x32xf32>
    %209 = math.tanh %208 : vector<1x32xf32>
    %cst_59 = arith.constant 1.000000e+00 : f32
    %210 = vector.broadcast %cst_59 : f32 to vector<1x32xf32>
    %211 = arith.subf %210, %203 : vector<1x32xf32>
    %212 = arith.mulf %211, %209 : vector<1x32xf32>
    %213 = arith.mulf %203, %185 : vector<1x32xf32>
    %214 = arith.addf %212, %213 : vector<1x32xf32>
    %cst_60 = arith.constant dense<0.000000e+00> : vector<1x96xf32>
    %215 = tpu.matmul %214, %38, %cst_60 {dimension_numbers = #tpu.dot_dimension_numbers<[1], [0], [0], [1], [0, 0, 1, 1], [], []>} : vector<1x32xf32>, vector<32x96xf32>, vector<1x96xf32> -> vector<1x96xf32>
    %216 = vector.extract_strided_slice %37 {offsets = [6, 0], sizes = [1, 96], strides = [1, 1]} : vector<8x96xf32> to vector<1x96xf32>
    %217 = vector.extract_strided_slice %216 {offsets = [0, 0], sizes = [1, 32], strides = [1, 1]} : vector<1x96xf32> to vector<1x32xf32>
    %218 = vector.extract_strided_slice %215 {offsets = [0, 0], sizes = [1, 32], strides = [1, 1]} : vector<1x96xf32> to vector<1x32xf32>
    %219 = arith.addf %217, %218 : vector<1x32xf32>
    %220 = arith.negf %219 : vector<1x32xf32>
    %221 = math.exp %220 : vector<1x32xf32>
    %cst_61 = arith.constant 1.000000e+00 : f32
    %222 = vector.broadcast %cst_61 : f32 to vector<1x32xf32>
    %223 = arith.addf %222, %221 : vector<1x32xf32>
    %224 = arith.divf %222, %223 : vector<1x32xf32>
    %225 = vector.extract_strided_slice %216 {offsets = [0, 32], sizes = [1, 32], strides = [1, 1]} : vector<1x96xf32> to vector<1x32xf32>
    %226 = vector.extract_strided_slice %215 {offsets = [0, 32], sizes = [1, 32], strides = [1, 1]} : vector<1x96xf32> to vector<1x32xf32>
    %227 = arith.addf %225, %226 : vector<1x32xf32>
    %228 = arith.negf %227 : vector<1x32xf32>
    %229 = math.exp %228 : vector<1x32xf32>
    %cst_62 = arith.constant 1.000000e+00 : f32
    %230 = vector.broadcast %cst_62 : f32 to vector<1x32xf32>
    %231 = arith.addf %230, %229 : vector<1x32xf32>
    %232 = arith.divf %230, %231 : vector<1x32xf32>
    %233 = vector.extract_strided_slice %216 {offsets = [0, 64], sizes = [1, 32], strides = [1, 1]} : vector<1x96xf32> to vector<1x32xf32>
    %234 = vector.extract_strided_slice %215 {offsets = [0, 64], sizes = [1, 32], strides = [1, 1]} : vector<1x96xf32> to vector<1x32xf32>
    %235 = arith.addf %234, %39 : vector<1x32xf32>
    %236 = arith.mulf %224, %235 : vector<1x32xf32>
    %237 = arith.addf %233, %236 : vector<1x32xf32>
    %238 = math.tanh %237 : vector<1x32xf32>
    %cst_63 = arith.constant 1.000000e+00 : f32
    %239 = vector.broadcast %cst_63 : f32 to vector<1x32xf32>
    %240 = arith.subf %239, %232 : vector<1x32xf32>
    %241 = arith.mulf %240, %238 : vector<1x32xf32>
    %242 = arith.mulf %232, %214 : vector<1x32xf32>
    %243 = arith.addf %241, %242 : vector<1x32xf32>
    %cst_64 = arith.constant dense<0.000000e+00> : vector<1x96xf32>
    %244 = tpu.matmul %243, %38, %cst_64 {dimension_numbers = #tpu.dot_dimension_numbers<[1], [0], [0], [1], [0, 0, 1, 1], [], []>} : vector<1x32xf32>, vector<32x96xf32>, vector<1x96xf32> -> vector<1x96xf32>
    %245 = vector.extract_strided_slice %37 {offsets = [7, 0], sizes = [1, 96], strides = [1, 1]} : vector<8x96xf32> to vector<1x96xf32>
    %246 = vector.extract_strided_slice %245 {offsets = [0, 0], sizes = [1, 32], strides = [1, 1]} : vector<1x96xf32> to vector<1x32xf32>
    %247 = vector.extract_strided_slice %244 {offsets = [0, 0], sizes = [1, 32], strides = [1, 1]} : vector<1x96xf32> to vector<1x32xf32>
    %248 = arith.addf %246, %247 : vector<1x32xf32>
    %249 = arith.negf %248 : vector<1x32xf32>
    %250 = math.exp %249 : vector<1x32xf32>
    %cst_65 = arith.constant 1.000000e+00 : f32
    %251 = vector.broadcast %cst_65 : f32 to vector<1x32xf32>
    %252 = arith.addf %251, %250 : vector<1x32xf32>
    %253 = arith.divf %251, %252 : vector<1x32xf32>
    %254 = vector.extract_strided_slice %245 {offsets = [0, 32], sizes = [1, 32], strides = [1, 1]} : vector<1x96xf32> to vector<1x32xf32>
    %255 = vector.extract_strided_slice %244 {offsets = [0, 32], sizes = [1, 32], strides = [1, 1]} : vector<1x96xf32> to vector<1x32xf32>
    %256 = arith.addf %254, %255 : vector<1x32xf32>
    %257 = arith.negf %256 : vector<1x32xf32>
    %258 = math.exp %257 : vector<1x32xf32>
    %cst_66 = arith.constant 1.000000e+00 : f32
    %259 = vector.broadcast %cst_66 : f32 to vector<1x32xf32>
    %260 = arith.addf %259, %258 : vector<1x32xf32>
    %261 = arith.divf %259, %260 : vector<1x32xf32>
    %262 = vector.extract_strided_slice %245 {offsets = [0, 64], sizes = [1, 32], strides = [1, 1]} : vector<1x96xf32> to vector<1x32xf32>
    %263 = vector.extract_strided_slice %244 {offsets = [0, 64], sizes = [1, 32], strides = [1, 1]} : vector<1x96xf32> to vector<1x32xf32>
    %264 = arith.addf %263, %39 : vector<1x32xf32>
    %265 = arith.mulf %253, %264 : vector<1x32xf32>
    %266 = arith.addf %262, %265 : vector<1x32xf32>
    %267 = math.tanh %266 : vector<1x32xf32>
    %cst_67 = arith.constant 1.000000e+00 : f32
    %268 = vector.broadcast %cst_67 : f32 to vector<1x32xf32>
    %269 = arith.subf %268, %261 : vector<1x32xf32>
    %270 = arith.mulf %269, %267 : vector<1x32xf32>
    %271 = arith.mulf %261, %243 : vector<1x32xf32>
    %272 = arith.addf %270, %271 : vector<1x32xf32>
    %273 = tpu.concatenate %69, %98, %127, %156, %185, %214, %243, %272 in 0 : vector<1x32xf32>, vector<1x32xf32>, vector<1x32xf32>, vector<1x32xf32>, vector<1x32xf32>, vector<1x32xf32>, vector<1x32xf32>, vector<1x32xf32> -> vector<8x32xf32>
    %c0_68 = arith.constant 0 : index
    %c0_69 = arith.constant 0 : index
    %274 = vector.load %arg8[%c0_68, %c0_69] : memref<8x32xf32, #tpu.memory_space<vmem>>, vector<8x32xf32>
    tpu.vector_store %arg8[%c0_68, %c0_69], %273 {strides = array<i32>} : memref<8x32xf32, #tpu.memory_space<vmem>>, vector<8x32xf32>,
    return
  }
  func.func @transform_0(%arg0: i32, %arg1: memref<8xi32, #tpu.memory_space<smem>>) -> (i32, i32) {
    %c0_i32 = arith.constant 0 : i32
    %c0_i32_0 = arith.constant 0 : i32
    %c0_i32_1 = arith.constant 0 : i32
    return %c0_i32, %c0_i32_0 : i32, i32
  }
  func.func @transform_1(%arg0: i32, %arg1: memref<8xi32, #tpu.memory_space<smem>>) -> (i32, i32) {
    %c0_i32 = arith.constant 0 : i32
    %c0_i32_0 = arith.constant 0 : i32
    %c0_i32_1 = arith.constant 0 : i32
    return %c0_i32, %c0_i32_0 : i32, i32
  }
  func.func @transform_2(%arg0: i32, %arg1: memref<8xi32, #tpu.memory_space<smem>>) -> (i32, i32) {
    %c0_i32 = arith.constant 0 : i32
    %c0_i32_0 = arith.constant 0 : i32
    %c0_i32_1 = arith.constant 0 : i32
    return %c0_i32, %c0_i32_0 : i32, i32
  }
  func.func @transform_3(%arg0: i32, %arg1: memref<8xi32, #tpu.memory_space<smem>>) -> (i32, i32) {
    %c0_i32 = arith.constant 0 : i32
    %c0_i32_0 = arith.constant 0 : i32
    %c0_i32_1 = arith.constant 0 : i32
    return %c0_i32, %c0_i32_0 : i32, i32
  }
  func.func @transform_4(%arg0: i32, %arg1: memref<8xi32, #tpu.memory_space<smem>>) -> (i32, i32) {
    %c0_i32 = arith.constant 0 : i32
    %c0_i32_0 = arith.constant 0 : i32
    %c0_i32_1 = arith.constant 0 : i32
    return %c0_i32, %c0_i32_0 : i32, i32
  }
  func.func @transform_5(%arg0: i32, %arg1: memref<8xi32, #tpu.memory_space<smem>>) -> (i32, i32) {
    %c0_i32 = arith.constant 0 : i32
    %c0_i32_0 = arith.constant 0 : i32
    %c0_i32_1 = arith.constant 0 : i32
    return %c0_i32, %c0_i32_0 : i32, i32
  }
  func.func @transform_6(%arg0: i32, %arg1: memref<8xi32, #tpu.memory_space<smem>>) -> (i32, i32) {
    %c0_i32 = arith.constant 0 : i32
    %c0_i32_0 = arith.constant 0 : i32
    %c0_i32_1 = arith.constant 0 : i32
    return %c0_i32, %c0_i32_0 : i32, i32
  }
}

</mosaic_0001>

<llo_original>
// kernel: tpu_custom_call.1
$region0: #{tpu_custom_call.1}
  #allocation0 [shape = 'u32[]', space=smem, size = 0x4, offset = 0x4, fixed_abs, tag = 'smem constant byte address 0x4 - core index']
  #allocation1 [shape = 'u32[144,128]{1,0:T(1,128)}', space=vmem, size = 0x12000, scoped, tag = 'internal scratch']
  #allocation2 [shape = 'f32[8,32]{1,0:T(8,128)}', space=vmem, size = 0x1000, scoped, tag = 'scratch operand']
  #allocation3 [shape = 's32[1]{0}', space=sflag, size = 0x4, scoped, tag = 'scoped memory for tpu_custom_call.1']
  #allocation4 [shape = 'u8[512]{0}', space=smem, size = 0x200, scoped, tag = 'prefetched SMEM operand 0']
  %s0 = inlined_call_operand.vmem [shape: s32[8], index: 0, kind: input, shape index: {}]
  %s1 = inlined_call_operand.vmem [shape: f32[50,32], index: 1, kind: input, shape index: {}]
  %s2 = inlined_call_operand.vmem [shape: f32[32,96], index: 2, kind: input, shape index: {}]
  %s3 = inlined_call_operand.vmem [shape: f32[32,96], index: 3, kind: input, shape index: {}]
  %s4 = inlined_call_operand.vmem [shape: f32[1,96], index: 4, kind: input, shape index: {}]
  %s5 = inlined_call_operand.vmem [shape: f32[1,32], index: 5, kind: input, shape index: {}]
  %s6 = inlined_call_operand.vmem [shape: f32[1,32], index: 6, kind: input, shape index: {}]
  %s7 = inlined_call_operand.hbm [shape: f32[8,32], index: 7, kind: output, shape index: {}]
  %s8 = sld [smem:[#allocation0]]
  $region34: #{tpu_custom_call.1} parent=0
    _
  %s10 = ssub.s32 1, %s8
  %s11 = scalar_select 0, %s10, %s8
  %s12 = sshll.u32 %s0, 4
  %s13 = int_to_ptr.vmem [resolvable:$true] %s12
  %15 = dma.vmem_to_smem %s13, 16, [#allocation4], [#allocation3]
  %16 = dma.done [#allocation3], 16
  %17 = sfence
  $region1: #{tpu_custom_call.1} parent=0
    #allocation5 [shape = 'u8[4096]{0}', space=vmem, size = 0x1000, scoped, tag = 'output window, operand 0, single buffered']
    #allocation6 [shape = 's32[1]{0}', space=sflag, size = 0x4, scoped, tag = 'scoped memory for tpu_custom_call.1']
    %18 = vsyncpa [#allocation6], 0
    // Predicated region
    $region2: #{tpu_custom_call.1} parent=1 // pred_check
      _
    $region3: #{tpu_custom_call.1} parent=1 // pred_check_branch
      %20 = sbr.rel (0) target = $region5
    $region4: #{tpu_custom_call.1} parent=1 // pred_region
      _
    $region5: #{tpu_custom_call.1} parent=1 // pred_fallthru
      _
    // Predicated region
    $region6: #{tpu_custom_call.1} parent=1 // pred_check
      _
    $region7: #{tpu_custom_call.1} parent=1 // pred_check_branch
      %22 = sbr.rel (0) target = $region9
    $region8: #{tpu_custom_call.1} parent=1 // pred_region
      _
    $region9: #{tpu_custom_call.1} parent=1 // pred_fallthru
      _
    // Predicated region
    $region10: #{tpu_custom_call.1} parent=1 // pred_check
      _
    $region11: #{tpu_custom_call.1} parent=1 // pred_check_branch
      %24 = sbr.rel (0) target = $region13
    $region12: #{tpu_custom_call.1} parent=1 // pred_region
      _
    $region13: #{tpu_custom_call.1} parent=1 // pred_fallthru
      _
    // Predicated region
    $region14: #{tpu_custom_call.1} parent=1 // pred_check
      _
    $region15: #{tpu_custom_call.1} parent=1 // pred_check_branch
      %26 = sbr.rel (0) target = $region17
    $region16: #{tpu_custom_call.1} parent=1 // pred_region
      _
    $region17: #{tpu_custom_call.1} parent=1 // pred_fallthru
      _
    // Predicated region
    $region18: #{tpu_custom_call.1} parent=1 // pred_check
      _
    $region19: #{tpu_custom_call.1} parent=1 // pred_check_branch
      %28 = sbr.rel (0) target = $region21
    $region20: #{tpu_custom_call.1} parent=1 // pred_region
      _
    $region21: #{tpu_custom_call.1} parent=1 // pred_fallthru
      _
    // Predicated region
    $region22: #{tpu_custom_call.1} parent=1 // pred_check
      _
    $region23: #{tpu_custom_call.1} parent=1 // pred_check_branch
      %30 = sbr.rel (0) target = $region25
    $region24: #{tpu_custom_call.1} parent=1 // pred_region
      _
    $region25: #{tpu_custom_call.1} parent=1 // pred_fallthru
      _
    %s31 = sld [smem:[#allocation4]]
    %s32 = scalar_lea.vmem %s1, %s31
    %v33 = vld [vmem:[%s32] sm:$0x1]
    %vm34 = vcmask 253952
    %35 = vst.msk [vmem:[#allocation2] sm:$0x1] %vm34, %v33
    %s36 = sld [smem:[#allocation4 + $0x1]]
    %s37 = scalar_lea.vmem %s1, %s36
    %v38 = vld [vmem:[%s37] sm:$0x1]
    %39 = vst.msk [vmem:[#allocation2 + $0x1] sm:$0x1] %vm34, %v38
    %s40 = sld [smem:[#allocation4 + $0x2]]
    %s41 = scalar_lea.vmem %s1, %s40
    %v42 = vld [vmem:[%s41] sm:$0x1]
    %43 = vst.msk [vmem:[#allocation2 + $0x2] sm:$0x1] %vm34, %v42
    %s44 = sld [smem:[#allocation4 + $0x3]]
    %s45 = scalar_lea.vmem %s1, %s44
    %v46 = vld [vmem:[%s45] sm:$0x1]
    %47 = vst.msk [vmem:[#allocation2 + $0x3] sm:$0x1] %vm34, %v46
    %s48 = sld [smem:[#allocation4 + $0x4]]
    %s49 = scalar_lea.vmem %s1, %s48
    %v50 = vld [vmem:[%s49] sm:$0x1]
    %51 = vst.msk [vmem:[#allocation2 + $0x4] sm:$0x1] %vm34, %v50
    %s52 = sld [smem:[#allocation4 + $0x5]]
    %s53 = scalar_lea.vmem %s1, %s52
    %v54 = vld [vmem:[%s53] sm:$0x1]
    %55 = vst.msk [vmem:[#allocation2 + $0x5] sm:$0x1] %vm34, %v54
    %s56 = sld [smem:[#allocation4 + $0x6]]
    %s57 = scalar_lea.vmem %s1, %s56
    %v58 = vld [vmem:[%s57] sm:$0x1]
    %59 = vst.msk [vmem:[#allocation2 + $0x6] sm:$0x1] %vm34, %v58
    %s60 = sld [smem:[#allocation4 + $0x7]]
    %s61 = scalar_lea.vmem %s1, %s60
    %v62 = vld [vmem:[%s61] sm:$0x1]
    %63 = vst.msk [vmem:[#allocation2 + $0x7] sm:$0x1] %vm34, %v62
    %v64 = vld [vmem:[#allocation2] sm:$0xff]
    %v65 = vld [vmem:[%s2] sm:$0xff]
    %v66 = vld [vmem:[%s2 + $0x8] sm:$0xff]
    %v67 = vld [vmem:[%s2 + $0x10] sm:$0xff]
    %v68 = vld [vmem:[%s2 + $0x18] sm:$0xff]
    %v69 = vld [vmem:[%s4] sm:$0x1]
    %v71 = vlaneseq
    %v72 = vshrl.u32 %v71, 7
    %v73 = vsub.s32 0, %v72
    %v74 = vrot.slane %v69, %v73
    %vm76 = vcmask 261120
    %v78 = vsel %vm76, %v64, 0
    %80 = vmatprep.subr.mxu0 0.0
    %81 = vmatpush1.msra.mxu0 %v65
    %82 = vmatprep.subr.mxu0 0.0
    %83 = vmatpush1.msra.mxu0 %v66
    %84 = vmatprep.subr.mxu0 0.0
    %85 = vmatpush1.msra.mxu0 %v67
    %86 = vmatprep.subr.mxu0 0.0
    %87 = vmatpush1.msra.mxu0 %v68
    %88 = vmatprep.subr.mxu0 0.0
    %89 = vmatpush1.msra.mxu0 0.0
    %90 = vmatprep.subr.mxu0 0.0
    %91 = vmatpush1.msra.mxu0 0.0
    %92 = vmatprep.subr.mxu0 0.0
    %93 = vmatpush1.msra.mxu0 0.0
    %94 = vmatprep.subr.mxu0 0.0
    %95 = vmatpush1.msra.mxu0 0.0
    %96 = vmatprep.subr.mxu0 0.0
    %97 = vmatpush1.msra.mxu0 0.0
    %98 = vmatprep.subr.mxu0 0.0
    %99 = vmatpush1.msra.mxu0 0.0
    %100 = vmatprep.subr.mxu0 0.0
    %101 = vmatpush1.msra.mxu0 0.0
    %102 = vmatprep.subr.mxu0 0.0
    %103 = vmatpush1.msra.mxu0 0.0
    %104 = vmatprep.subr.mxu0 0.0
    %105 = vmatpush1.msra.mxu0 0.0
    %106 = vmatprep.subr.mxu0 0.0
    %107 = vmatpush1.msra.mxu0 0.0
    %108 = vmatprep.subr.mxu0 0.0
    %109 = vmatpush1.msra.mxu0 0.0
    %110 = vmatprep.subr.mxu0 0.0
    %111 = vmatpush1.msra.mxu0 0.0
    %112 = vmatprep.subr.mxu0 0.0
    %113 = vmatpush1.msra.mxu0 0.0
    %114 = vmatprep.subr.mxu0 0.0
    %115 = vmatpush1.msra.mxu0 0.0
    %116 = vmatprep.subr.mxu0 0.0
    %117 = vmatpush1.msra.mxu0 0.0
    %118 = vmatprep.subr.mxu0 0.0
    %119 = vmatpush1.msra.mxu0 0.0
    %120 = vmatprep.subr.mxu0 0.0
    %121 = vmatpush1.msra.mxu0 0.0
    %122 = vmatprep.subr.mxu0 0.0
    %123 = vmatpush1.msra.mxu0 0.0
    %124 = vmatprep.subr.mxu0 0.0
    %125 = vmatpush1.msra.mxu0 0.0
    %126 = vmatprep.subr.mxu0 0.0
    %127 = vmatpush1.msra.mxu0 0.0
    %128 = vmatprep.subr.mxu0 0.0
    %129 = vmatpush1.msra.mxu0 0.0
    %130 = vmatprep.subr.mxu0 0.0
    %131 = vmatpush1.msra.mxu0 0.0
    %132 = vmatprep.subr.mxu0 0.0
    %133 = vmatpush1.msra.mxu0 0.0
    %134 = vmatprep.subr.mxu0 0.0
    %135 = vmatpush1.msra.mxu0 0.0
    %136 = vmatprep.subr.mxu0 0.0
    %137 = vmatpush1.msra.mxu0 0.0
    %138 = vmatprep.subr.mxu0 0.0
    %139 = vmatpush1.msra.mxu0 0.0
    %140 = vmatprep.subr.mxu0 0.0
    %141 = vmatpush1.msra.mxu0 0.0
    %142 = vmatprep.subr.mxu0 0.0
    %143 = vmatpush1.msra.mxu0 0.0
    %144 = vmatprep.mubr.f32.mxu0 0.0
    %145 = vmatmul.mubr.f32.gmra.mrb[0].mxu0 %v78
    %v146 = vpop.f32.mrb[0].mxu0
    %v147 = vadd.f32 %v74, %v146
    %v148 = vpop.f32.mrb[0].mxu0
    %149 = vdwg.mxu0
    %v150 = vld [vmem:[%s3] sm:$0xff]
    %v151 = vld [vmem:[%s3 + $0x8] sm:$0xff]
    %v152 = vld [vmem:[%s3 + $0x10] sm:$0xff]
    %v153 = vld [vmem:[%s3 + $0x18] sm:$0xff]
    %v154 = vld [vmem:[%s5] sm:$0x1]
    %v155 = vld [vmem:[%s6] sm:$0x1]
    %v157 = vsel %vm76, %v155, 0
    %159 = vmatprep.subr.mxu0 0.0
    %160 = vmatpush1.msra.mxu0 %v150
    %161 = vmatprep.subr.mxu0 0.0
    %162 = vmatpush1.msra.mxu0 %v151
    %163 = vmatprep.subr.mxu0 0.0
    %164 = vmatpush1.msra.mxu0 %v152
    %165 = vmatprep.subr.mxu0 0.0
    %166 = vmatpush1.msra.mxu0 %v153
    %167 = vmatprep.subr.mxu0 0.0
    %168 = vmatpush1.msra.mxu0 0.0
    %169 = vmatprep.subr.mxu0 0.0
    %170 = vmatpush1.msra.mxu0 0.0
    %171 = vmatprep.subr.mxu0 0.0
    %172 = vmatpush1.msra.mxu0 0.0
    %173 = vmatprep.subr.mxu0 0.0
    %174 = vmatpush1.msra.mxu0 0.0
    %175 = vmatprep.subr.mxu0 0.0
    %176 = vmatpush1.msra.mxu0 0.0
    %177 = vmatprep.subr.mxu0 0.0
    %178 = vmatpush1.msra.mxu0 0.0
    %179 = vmatprep.subr.mxu0 0.0
    %180 = vmatpush1.msra.mxu0 0.0
    %181 = vmatprep.subr.mxu0 0.0
    %182 = vmatpush1.msra.mxu0 0.0
    %183 = vmatprep.subr.mxu0 0.0
    %184 = vmatpush1.msra.mxu0 0.0
    %185 = vmatprep.subr.mxu0 0.0
    %186 = vmatpush1.msra.mxu0 0.0
    %187 = vmatprep.subr.mxu0 0.0
    %188 = vmatpush1.msra.mxu0 0.0
    %189 = vmatprep.subr.mxu0 0.0
    %190 = vmatpush1.msra.mxu0 0.0
    %191 = vmatprep.subr.mxu0 0.0
    %192 = vmatpush1.msra.mxu0 0.0
    %193 = vmatprep.subr.mxu0 0.0
    %194 = vmatpush1.msra.mxu0 0.0
    %195 = vmatprep.subr.mxu0 0.0
    %196 = vmatpush1.msra.mxu0 0.0
    %197 = vmatprep.subr.mxu0 0.0
    %198 = vmatpush1.msra.mxu0 0.0
    %199 = vmatprep.subr.mxu0 0.0
    %200 = vmatpush1.msra.mxu0 0.0
    %201 = vmatprep.subr.mxu0 0.0
    %202 = vmatpush1.msra.mxu0 0.0
    %203 = vmatprep.subr.mxu0 0.0
    %204 = vmatpush1.msra.mxu0 0.0
    %205 = vmatprep.subr.mxu0 0.0
    %206 = vmatpush1.msra.mxu0 0.0
    %207 = vmatprep.subr.mxu0 0.0
    %208 = vmatpush1.msra.mxu0 0.0
    %209 = vmatprep.subr.mxu0 0.0
    %210 = vmatpush1.msra.mxu0 0.0
    %211 = vmatprep.subr.mxu0 0.0
    %212 = vmatpush1.msra.mxu0 0.0
    %213 = vmatprep.subr.mxu0 0.0
    %214 = vmatpush1.msra.mxu0 0.0
    %215 = vmatprep.subr.mxu0 0.0
    %216 = vmatpush1.msra.mxu0 0.0
    %217 = vmatprep.subr.mxu0 0.0
    %218 = vmatpush1.msra.mxu0 0.0
    %219 = vmatprep.subr.mxu0 0.0
    %220 = vmatpush1.msra.mxu0 0.0
    %221 = vmatprep.subr.mxu0 0.0
    %222 = vmatpush1.msra.mxu0 0.0
    %223 = vmatprep.mubr.f32.mxu0 0.0
    %224 = vmatmul.mubr.f32.gmra.mrb[0].mxu0 %v157
    %v225 = vpop.f32.mrb[0].mxu0
    %v226 = vadd.f32 0.0, %v225
    %v227 = vpop.f32.mrb[0].mxu0
    %228 = vdwg.mxu0
    %v229 = vadd.f32 %v147, %v226
    %v230 = vxor.u32 %v229, 2147483648
    %v231 = vmul.f32 %v230, 1.442695
    %v232 = vpow.pop %v231
    %v233 = vadd.f32 %v232, 1.0
    %v234 = vrcp.pop %v233
    %v235 = vmul.f32 1.0, %v234
    %v237 = vlaneseq
    %v238 = vshrl.u32 %v237, 7
    %v239 = vsub.s32 0, %v238
    %v240 = vrot.slane %v154, %v239
    %241 = vrot.lane.b32.xlu0 %v240, 64
    %v242 = vpop.permute.xlu0 %241
    %v244 = vadd.f32 %v226, %v242
    %246 = vrot.lane.b32.xlu0 %v244, 64
    %v247 = vpop.permute.xlu0 %246
    %v249 = vmul.f32 %v235, %v247
    %251 = vrot.lane.b32.xlu0 %v249, 64
    %v252 = vpop.permute.xlu0 %251
    %v254 = vadd.f32 %v147, %v252
    %v255 = vtanh.pop %v254
    %v256 = vsub.f32 1.0, %v235
    %258 = vrot.lane.b32.xlu0 %v255, 96
    %v259 = vpop.permute.xlu0 %258
    %v261 = vmul.f32 %v256, %v259
    %v262 = vlaneseq
    %v263 = vshrl.u32 %v262, 7
    %v264 = vsub.s32 0, %v263
    %v265 = vrot.slane %v155, %v264
    %266 = vrot.lane.b32.xlu0 %v265, 32
    %v267 = vpop.permute.xlu0 %266
    %v269 = vmul.f32 %v235, %v267
    %v270 = vadd.f32 %v261, %v269
    %272 = vrot.lane.b32.xlu0 %v270, 96
    %v273 = vpop.permute.xlu0 %272
    %v274 = vsel %vm76, %v273, 0
    %276 = vmatprep.subr.mxu0 0.0
    %277 = vmatpush1.msra.mxu0 %v150
    %278 = vmatprep.subr.mxu0 0.0
    %279 = vmatpush1.msra.mxu0 %v151
    %280 = vmatprep.subr.mxu0 0.0
    %281 = vmatpush1.msra.mxu0 %v152
    %282 = vmatprep.subr.mxu0 0.0
    %283 = vmatpush1.msra.mxu0 %v153
    %284 = vmatprep.subr.mxu0 0.0
    %285 = vmatpush1.msra.mxu0 0.0
    %286 = vmatprep.subr.mxu0 0.0
    %287 = vmatpush1.msra.mxu0 0.0
    %288 = vmatprep.subr.mxu0 0.0
    %289 = vmatpush1.msra.mxu0 0.0
    %290 = vmatprep.subr.mxu0 0.0
    %291 = vmatpush1.msra.mxu0 0.0
    %292 = vmatprep.subr.mxu0 0.0
    %293 = vmatpush1.msra.mxu0 0.0
    %294 = vmatprep.subr.mxu0 0.0
    %295 = vmatpush1.msra.mxu0 0.0
    %296 = vmatprep.subr.mxu0 0.0
    %297 = vmatpush1.msra.mxu0 0.0
    %298 = vmatprep.subr.mxu0 0.0
    %299 = vmatpush1.msra.mxu0 0.0
    %300 = vmatprep.subr.mxu0 0.0
    %301 = vmatpush1.msra.mxu0 0.0
    %302 = vmatprep.subr.mxu0 0.0
    %303 = vmatpush1.msra.mxu0 0.0
    %304 = vmatprep.subr.mxu0 0.0
    %305 = vmatpush1.msra.mxu0 0.0
    %306 = vmatprep.subr.mxu0 0.0
    %307 = vmatpush1.msra.mxu0 0.0
    %308 = vmatprep.subr.mxu0 0.0
    %309 = vmatpush1.msra.mxu0 0.0
    %310 = vmatprep.subr.mxu0 0.0
    %311 = vmatpush1.msra.mxu0 0.0
    %312 = vmatprep.subr.mxu0 0.0
    %313 = vmatpush1.msra.mxu0 0.0
    %314 = vmatprep.subr.mxu0 0.0
    %315 = vmatpush1.msra.mxu0 0.0
    %316 = vmatprep.subr.mxu0 0.0
    %317 = vmatpush1.msra.mxu0 0.0
    %318 = vmatprep.subr.mxu0 0.0
    %319 = vmatpush1.msra.mxu0 0.0
    %320 = vmatprep.subr.mxu0 0.0
    %321 = vmatpush1.msra.mxu0 0.0
    %322 = vmatprep.subr.mxu0 0.0
    %323 = vmatpush1.msra.mxu0 0.0
    %324 = vmatprep.subr.mxu0 0.0
    %325 = vmatpush1.msra.mxu0 0.0
    %326 = vmatprep.subr.mxu0 0.0
    %327 = vmatpush1.msra.mxu0 0.0
    %328 = vmatprep.subr.mxu0 0.0
    %329 = vmatpush1.msra.mxu0 0.0
    %330 = vmatprep.subr.mxu0 0.0
    %331 = vmatpush1.msra.mxu0 0.0
    %332 = vmatprep.subr.mxu0 0.0
    %333 = vmatpush1.msra.mxu0 0.0
    %334 = vmatprep.subr.mxu0 0.0
    %335 = vmatpush1.msra.mxu0 0.0
    %336 = vmatprep.subr.mxu0 0.0
    %337 = vmatpush1.msra.mxu0 0.0
    %338 = vmatprep.subr.mxu0 0.0
    %339 = vmatpush1.msra.mxu0 0.0
    %340 = vmatprep.mubr.f32.mxu0 0.0
    %341 = vmatmul.mubr.f32.gmra.mrb[0].mxu0 %v274
    %v342 = vpop.f32.mrb[0].mxu0
    %v343 = vadd.f32 0.0, %v342
    %v344 = vpop.f32.mrb[0].mxu0
    %345 = vdwg.mxu0
    %v347 = vrot.slane %v343, 7
    %v349 = vadd.f32 %v147, %v347
    %v350 = vxor.u32 %v349, 2147483648
    %v351 = vmul.f32 %v350, 1.442695
    %v352 = vpow.pop %v351
    %v353 = vadd.f32 %v352, 1.0
    %v354 = vrcp.pop %v353
    %v355 = vmul.f32 1.0, %v354
    %v356 = vadd.f32 %v343, %v242
    %v358 = vrot.slane %v356, 7
    %359 = vrot.lane.b32.xlu0 %v358, 64
    %v360 = vpop.permute.xlu0 %359
    %v362 = vmul.f32 %v355, %v360
    %364 = vrot.lane.b32.xlu0 %v362, 64
    %v365 = vpop.permute.xlu0 %364
    %v367 = vadd.f32 %v147, %v365
    %v368 = vtanh.pop %v367
    %v369 = vsub.f32 1.0, %v355
    %371 = vrot.lane.b32.xlu0 %v368, 96
    %v372 = vpop.permute.xlu0 %371
    %v374 = vmul.f32 %v369, %v372
    %v375 = vrot.slane %v270, 7
    %v377 = vmul.f32 %v355, %v375
    %v378 = vadd.f32 %v374, %v377
    %v380 = vrot.slane %v378, 1
    %381 = vrot.lane.b32.xlu0 %v380, 96
    %v382 = vpop.permute.xlu0 %381
    %v383 = vsel %vm76, %v382, 0
    %385 = vmatprep.subr.mxu0 0.0
    %386 = vmatpush1.msra.mxu0 %v150
    %387 = vmatprep.subr.mxu0 0.0
    %388 = vmatpush1.msra.mxu0 %v151
    %389 = vmatprep.subr.mxu0 0.0
    %390 = vmatpush1.msra.mxu0 %v152
    %391 = vmatprep.subr.mxu0 0.0
    %392 = vmatpush1.msra.mxu0 %v153
    %393 = vmatprep.subr.mxu0 0.0
    %394 = vmatpush1.msra.mxu0 0.0
    %395 = vmatprep.subr.mxu0 0.0
    %396 = vmatpush1.msra.mxu0 0.0
    %397 = vmatprep.subr.mxu0 0.0
    %398 = vmatpush1.msra.mxu0 0.0
    %399 = vmatprep.subr.mxu0 0.0
    %400 = vmatpush1.msra.mxu0 0.0
    %401 = vmatprep.subr.mxu0 0.0
    %402 = vmatpush1.msra.mxu0 0.0
    %403 = vmatprep.subr.mxu0 0.0
    %404 = vmatpush1.msra.mxu0 0.0
    %405 = vmatprep.subr.mxu0 0.0
    %406 = vmatpush1.msra.mxu0 0.0
    %407 = vmatprep.subr.mxu0 0.0
    %408 = vmatpush1.msra.mxu0 0.0
    %409 = vmatprep.subr.mxu0 0.0
    %410 = vmatpush1.msra.mxu0 0.0
    %411 = vmatprep.subr.mxu0 0.0
    %412 = vmatpush1.msra.mxu0 0.0
    %413 = vmatprep.subr.mxu0 0.0
    %414 = vmatpush1.msra.mxu0 0.0
    %415 = vmatprep.subr.mxu0 0.0
    %416 = vmatpush1.msra.mxu0 0.0
    %417 = vmatprep.subr.mxu0 0.0
    %418 = vmatpush1.msra.mxu0 0.0
    %419 = vmatprep.subr.mxu0 0.0
    %420 = vmatpush1.msra.mxu0 0.0
    %421 = vmatprep.subr.mxu0 0.0
    %422 = vmatpush1.msra.mxu0 0.0
    %423 = vmatprep.subr.mxu0 0.0
    %424 = vmatpush1.msra.mxu0 0.0
    %425 = vmatprep.subr.mxu0 0.0
    %426 = vmatpush1.msra.mxu0 0.0
    %427 = vmatprep.subr.mxu0 0.0
    %428 = vmatpush1.msra.mxu0 0.0
    %429 = vmatprep.subr.mxu0 0.0
    %430 = vmatpush1.msra.mxu0 0.0
    %431 = vmatprep.subr.mxu0 0.0
    %432 = vmatpush1.msra.mxu0 0.0
    %433 = vmatprep.subr.mxu0 0.0
    %434 = vmatpush1.msra.mxu0 0.0
    %435 = vmatprep.subr.mxu0 0.0
    %436 = vmatpush1.msra.mxu0 0.0
    %437 = vmatprep.subr.mxu0 0.0
    %438 = vmatpush1.msra.mxu0 0.0
    %439 = vmatprep.subr.mxu0 0.0
    %440 = vmatpush1.msra.mxu0 0.0
    %441 = vmatprep.subr.mxu0 0.0
    %442 = vmatpush1.msra.mxu0 0.0
    %443 = vmatprep.subr.mxu0 0.0
    %444 = vmatpush1.msra.mxu0 0.0
    %445 = vmatprep.subr.mxu0 0.0
    %446 = vmatpush1.msra.mxu0 0.0
    %447 = vmatprep.subr.mxu0 0.0
    %448 = vmatpush1.msra.mxu0 0.0
    %449 = vmatprep.mubr.f32.mxu0 0.0
    %450 = vmatmul.mubr.f32.gmra.mrb[0].mxu0 %v383
    %v451 = vpop.f32.mrb[0].mxu0
    %v452 = vadd.f32 0.0, %v451
    %v453 = vpop.f32.mrb[0].mxu0
    %454 = vdwg.mxu0
    %v456 = vrot.slane %v452, 6
    %v458 = vadd.f32 %v147, %v456
    %v459 = vxor.u32 %v458, 2147483648
    %v460 = vmul.f32 %v459, 1.442695
    %v461 = vpow.pop %v460
    %v462 = vadd.f32 %v461, 1.0
    %v463 = vrcp.pop %v462
    %v464 = vmul.f32 1.0, %v463
    %v465 = vadd.f32 %v452, %v242
    %v467 = vrot.slane %v465, 6
    %468 = vrot.lane.b32.xlu0 %v467, 64
    %v469 = vpop.permute.xlu0 %468
    %v471 = vmul.f32 %v464, %v469
    %473 = vrot.lane.b32.xlu0 %v471, 64
    %v474 = vpop.permute.xlu0 %473
    %v476 = vadd.f32 %v147, %v474
    %v477 = vtanh.pop %v476
    %v478 = vsub.f32 1.0, %v464
    %480 = vrot.lane.b32.xlu0 %v477, 96
    %v481 = vpop.permute.xlu0 %480
    %v483 = vmul.f32 %v478, %v481
    %v484 = vrot.slane %v378, 7
    %v486 = vmul.f32 %v464, %v484
    %v487 = vadd.f32 %v483, %v486
    %v489 = vrot.slane %v487, 2
    %490 = vrot.lane.b32.xlu0 %v489, 96
    %v491 = vpop.permute.xlu0 %490
    %v492 = vsel %vm76, %v491, 0
    %494 = vmatprep.subr.mxu0 0.0
    %495 = vmatpush1.msra.mxu0 %v150
    %496 = vmatprep.subr.mxu0 0.0
    %497 = vmatpush1.msra.mxu0 %v151
    %498 = vmatprep.subr.mxu0 0.0
    %499 = vmatpush1.msra.mxu0 %v152
    %500 = vmatprep.subr.mxu0 0.0
    %501 = vmatpush1.msra.mxu0 %v153
    %502 = vmatprep.subr.mxu0 0.0
    %503 = vmatpush1.msra.mxu0 0.0
    %504 = vmatprep.subr.mxu0 0.0
    %505 = vmatpush1.msra.mxu0 0.0
    %506 = vmatprep.subr.mxu0 0.0
    %507 = vmatpush1.msra.mxu0 0.0
    %508 = vmatprep.subr.mxu0 0.0
    %509 = vmatpush1.msra.mxu0 0.0
    %510 = vmatprep.subr.mxu0 0.0
    %511 = vmatpush1.msra.mxu0 0.0
    %512 = vmatprep.subr.mxu0 0.0
    %513 = vmatpush1.msra.mxu0 0.0
    %514 = vmatprep.subr.mxu0 0.0
    %515 = vmatpush1.msra.mxu0 0.0
    %516 = vmatprep.subr.mxu0 0.0
    %517 = vmatpush1.msra.mxu0 0.0
    %518 = vmatprep.subr.mxu0 0.0
    %519 = vmatpush1.msra.mxu0 0.0
    %520 = vmatprep.subr.mxu0 0.0
    %521 = vmatpush1.msra.mxu0 0.0
    %522 = vmatprep.subr.mxu0 0.0
    %523 = vmatpush1.msra.mxu0 0.0
    %524 = vmatprep.subr.mxu0 0.0
    %525 = vmatpush1.msra.mxu0 0.0
    %526 = vmatprep.subr.mxu0 0.0
    %527 = vmatpush1.msra.mxu0 0.0
    %528 = vmatprep.subr.mxu0 0.0
    %529 = vmatpush1.msra.mxu0 0.0
    %530 = vmatprep.subr.mxu0 0.0
    %531 = vmatpush1.msra.mxu0 0.0
    %532 = vmatprep.subr.mxu0 0.0
    %533 = vmatpush1.msra.mxu0 0.0
    %534 = vmatprep.subr.mxu0 0.0
    %535 = vmatpush1.msra.mxu0 0.0
    %536 = vmatprep.subr.mxu0 0.0
    %537 = vmatpush1.msra.mxu0 0.0
    %538 = vmatprep.subr.mxu0 0.0
    %539 = vmatpush1.msra.mxu0 0.0
    %540 = vmatprep.subr.mxu0 0.0
    %541 = vmatpush1.msra.mxu0 0.0
    %542 = vmatprep.subr.mxu0 0.0
    %543 = vmatpush1.msra.mxu0 0.0
    %544 = vmatprep.subr.mxu0 0.0
    %545 = vmatpush1.msra.mxu0 0.0
    %546 = vmatprep.subr.mxu0 0.0
    %547 = vmatpush1.msra.mxu0 0.0
    %548 = vmatprep.subr.mxu0 0.0
    %549 = vmatpush1.msra.mxu0 0.0
    %550 = vmatprep.subr.mxu0 0.0
    %551 = vmatpush1.msra.mxu0 0.0
    %552 = vmatprep.subr.mxu0 0.0
    %553 = vmatpush1.msra.mxu0 0.0
    %554 = vmatprep.subr.mxu0 0.0
    %555 = vmatpush1.msra.mxu0 0.0
    %556 = vmatprep.subr.mxu0 0.0
    %557 = vmatpush1.msra.mxu0 0.0
    %558 = vmatprep.mubr.f32.mxu0 0.0
    %559 = vmatmul.mubr.f32.gmra.mrb[0].mxu0 %v492
    %v560 = vpop.f32.mrb[0].mxu0
    %v561 = vadd.f32 0.0, %v560
    %v562 = vpop.f32.mrb[0].mxu0
    %563 = vdwg.mxu0
    %v565 = vrot.slane %v561, 5
    %v567 = vadd.f32 %v147, %v565
    %v568 = vxor.u32 %v567, 2147483648
    %v569 = vmul.f32 %v568, 1.442695
    %v570 = vpow.pop %v569
    %v571 = vadd.f32 %v570, 1.0
    %v572 = vrcp.pop %v571
    %v573 = vmul.f32 1.0, %v572
    %v574 = vadd.f32 %v561, %v242
    %v576 = vrot.slane %v574, 5
    %577 = vrot.lane.b32.xlu0 %v576, 64
    %v578 = vpop.permute.xlu0 %577
    %v580 = vmul.f32 %v573, %v578
    %582 = vrot.lane.b32.xlu0 %v580, 64
    %v583 = vpop.permute.xlu0 %582
    %v585 = vadd.f32 %v147, %v583
    %v586 = vtanh.pop %v585
    %v587 = vsub.f32 1.0, %v573
    %589 = vrot.lane.b32.xlu0 %v586, 96
    %v590 = vpop.permute.xlu0 %589
    %v592 = vmul.f32 %v587, %v590
    %v593 = vrot.slane %v487, 7
    %v595 = vmul.f32 %v573, %v593
    %v596 = vadd.f32 %v592, %v595
    %v598 = vrot.slane %v596, 3
    %599 = vrot.lane.b32.xlu0 %v598, 96
    %v600 = vpop.permute.xlu0 %599
    %v601 = vsel %vm76, %v600, 0
    %603 = vmatprep.subr.mxu0 0.0
    %604 = vmatpush1.msra.mxu0 %v150
    %605 = vmatprep.subr.mxu0 0.0
    %606 = vmatpush1.msra.mxu0 %v151
    %607 = vmatprep.subr.mxu0 0.0
    %608 = vmatpush1.msra.mxu0 %v152
    %609 = vmatprep.subr.mxu0 0.0
    %610 = vmatpush1.msra.mxu0 %v153
    %611 = vmatprep.subr.mxu0 0.0
    %612 = vmatpush1.msra.mxu0 0.0
    %613 = vmatprep.subr.mxu0 0.0
    %614 = vmatpush1.msra.mxu0 0.0
    %615 = vmatprep.subr.mxu0 0.0
    %616 = vmatpush1.msra.mxu0 0.0
    %617 = vmatprep.subr.mxu0 0.0
    %618 = vmatpush1.msra.mxu0 0.0
    %619 = vmatprep.subr.mxu0 0.0
    %620 = vmatpush1.msra.mxu0 0.0
    %621 = vmatprep.subr.mxu0 0.0
    %622 = vmatpush1.msra.mxu0 0.0
    %623 = vmatprep.subr.mxu0 0.0
    %624 = vmatpush1.msra.mxu0 0.0
    %625 = vmatprep.subr.mxu0 0.0
    %626 = vmatpush1.msra.mxu0 0.0
    %627 = vmatprep.subr.mxu0 0.0
    %628 = vmatpush1.msra.mxu0 0.0
    %629 = vmatprep.subr.mxu0 0.0
    %630 = vmatpush1.msra.mxu0 0.0
    %631 = vmatprep.subr.mxu0 0.0
    %632 = vmatpush1.msra.mxu0 0.0
    %633 = vmatprep.subr.mxu0 0.0
    %634 = vmatpush1.msra.mxu0 0.0
    %635 = vmatprep.subr.mxu0 0.0
    %636 = vmatpush1.msra.mxu0 0.0
    %637 = vmatprep.subr.mxu0 0.0
    %638 = vmatpush1.msra.mxu0 0.0
    %639 = vmatprep.subr.mxu0 0.0
    %640 = vmatpush1.msra.mxu0 0.0
    %641 = vmatprep.subr.mxu0 0.0
    %642 = vmatpush1.msra.mxu0 0.0
    %643 = vmatprep.subr.mxu0 0.0
    %644 = vmatpush1.msra.mxu0 0.0
    %645 = vmatprep.subr.mxu0 0.0
    %646 = vmatpush1.msra.mxu0 0.0
    %647 = vmatprep.subr.mxu0 0.0
    %648 = vmatpush1.msra.mxu0 0.0
    %649 = vmatprep.subr.mxu0 0.0
    %650 = vmatpush1.msra.mxu0 0.0
    %651 = vmatprep.subr.mxu0 0.0
    %652 = vmatpush1.msra.mxu0 0.0
    %653 = vmatprep.subr.mxu0 0.0
    %654 = vmatpush1.msra.mxu0 0.0
    %655 = vmatprep.subr.mxu0 0.0
    %656 = vmatpush1.msra.mxu0 0.0
    %657 = vmatprep.subr.mxu0 0.0
    %658 = vmatpush1.msra.mxu0 0.0
    %659 = vmatprep.subr.mxu0 0.0
    %660 = vmatpush1.msra.mxu0 0.0
    %661 = vmatprep.subr.mxu0 0.0
    %662 = vmatpush1.msra.mxu0 0.0
    %663 = vmatprep.subr.mxu0 0.0
    %664 = vmatpush1.msra.mxu0 0.0
    %665 = vmatprep.subr.mxu0 0.0
    %666 = vmatpush1.msra.mxu0 0.0
    %667 = vmatprep.mubr.f32.mxu0 0.0
    %668 = vmatmul.mubr.f32.gmra.mrb[0].mxu0 %v601
    %v669 = vpop.f32.mrb[0].mxu0
    %v670 = vadd.f32 0.0, %v669
    %v671 = vpop.f32.mrb[0].mxu0
    %672 = vdwg.mxu0
    %v674 = vrot.slane %v670, 4
    %v676 = vadd.f32 %v147, %v674
    %v677 = vxor.u32 %v676, 2147483648
    %v678 = vmul.f32 %v677, 1.442695
    %v679 = vpow.pop %v678
    %v680 = vadd.f32 %v679, 1.0
    %v681 = vrcp.pop %v680
    %v682 = vmul.f32 1.0, %v681
    %v683 = vadd.f32 %v670, %v242
    %v685 = vrot.slane %v683, 4
    %686 = vrot.lane.b32.xlu0 %v685, 64
    %v687 = vpop.permute.xlu0 %686
    %v689 = vmul.f32 %v682, %v687
    %691 = vrot.lane.b32.xlu0 %v689, 64
    %v692 = vpop.permute.xlu0 %691
    %v694 = vadd.f32 %v147, %v692
    %v695 = vtanh.pop %v694
    %v696 = vsub.f32 1.0, %v682
    %698 = vrot.lane.b32.xlu0 %v695, 96
    %v699 = vpop.permute.xlu0 %698
    %v701 = vmul.f32 %v696, %v699
    %v702 = vrot.slane %v596, 7
    %v704 = vmul.f32 %v682, %v702
    %v705 = vadd.f32 %v701, %v704
    %v707 = vrot.slane %v705, 4
    %708 = vrot.lane.b32.xlu0 %v707, 96
    %v709 = vpop.permute.xlu0 %708
    %v710 = vsel %vm76, %v709, 0
    %712 = vmatprep.subr.mxu0 0.0
    %713 = vmatpush1.msra.mxu0 %v150
    %714 = vmatprep.subr.mxu0 0.0
    %715 = vmatpush1.msra.mxu0 %v151
    %716 = vmatprep.subr.mxu0 0.0
    %717 = vmatpush1.msra.mxu0 %v152
    %718 = vmatprep.subr.mxu0 0.0
    %719 = vmatpush1.msra.mxu0 %v153
    %720 = vmatprep.subr.mxu0 0.0
    %721 = vmatpush1.msra.mxu0 0.0
    %722 = vmatprep.subr.mxu0 0.0
    %723 = vmatpush1.msra.mxu0 0.0
    %724 = vmatprep.subr.mxu0 0.0
    %725 = vmatpush1.msra.mxu0 0.0
    %726 = vmatprep.subr.mxu0 0.0
    %727 = vmatpush1.msra.mxu0 0.0
    %728 = vmatprep.subr.mxu0 0.0
    %729 = vmatpush1.msra.mxu0 0.0
    %730 = vmatprep.subr.mxu0 0.0
    %731 = vmatpush1.msra.mxu0 0.0
    %732 = vmatprep.subr.mxu0 0.0
    %733 = vmatpush1.msra.mxu0 0.0
    %734 = vmatprep.subr.mxu0 0.0
    %735 = vmatpush1.msra.mxu0 0.0
    %736 = vmatprep.subr.mxu0 0.0
    %737 = vmatpush1.msra.mxu0 0.0
    %738 = vmatprep.subr.mxu0 0.0
    %739 = vmatpush1.msra.mxu0 0.0
    %740 = vmatprep.subr.mxu0 0.0
    %741 = vmatpush1.msra.mxu0 0.0
    %742 = vmatprep.subr.mxu0 0.0
    %743 = vmatpush1.msra.mxu0 0.0
    %744 = vmatprep.subr.mxu0 0.0
    %745 = vmatpush1.msra.mxu0 0.0
    %746 = vmatprep.subr.mxu0 0.0
    %747 = vmatpush1.msra.mxu0 0.0
    %748 = vmatprep.subr.mxu0 0.0
    %749 = vmatpush1.msra.mxu0 0.0
    %750 = vmatprep.subr.mxu0 0.0
    %751 = vmatpush1.msra.mxu0 0.0
    %752 = vmatprep.subr.mxu0 0.0
    %753 = vmatpush1.msra.mxu0 0.0
    %754 = vmatprep.subr.mxu0 0.0
    %755 = vmatpush1.msra.mxu0 0.0
    %756 = vmatprep.subr.mxu0 0.0
    %757 = vmatpush1.msra.mxu0 0.0
    %758 = vmatprep.subr.mxu0 0.0
    %759 = vmatpush1.msra.mxu0 0.0
    %760 = vmatprep.subr.mxu0 0.0
    %761 = vmatpush1.msra.mxu0 0.0
    %762 = vmatprep.subr.mxu0 0.0
    %763 = vmatpush1.msra.mxu0 0.0
    %764 = vmatprep.subr.mxu0 0.0
    %765 = vmatpush1.msra.mxu0 0.0
    %766 = vmatprep.subr.mxu0 0.0
    %767 = vmatpush1.msra.mxu0 0.0
    %768 = vmatprep.subr.mxu0 0.0
    %769 = vmatpush1.msra.mxu0 0.0
    %770 = vmatprep.subr.mxu0 0.0
    %771 = vmatpush1.msra.mxu0 0.0
    %772 = vmatprep.subr.mxu0 0.0
    %773 = vmatpush1.msra.mxu0 0.0
    %774 = vmatprep.subr.mxu0 0.0
    %775 = vmatpush1.msra.mxu0 0.0
    %776 = vmatprep.mubr.f32.mxu0 0.0
    %777 = vmatmul.mubr.f32.gmra.mrb[0].mxu0 %v710
    %v778 = vpop.f32.mrb[0].mxu0
    %v779 = vadd.f32 0.0, %v778
    %v780 = vpop.f32.mrb[0].mxu0
    %781 = vdwg.mxu0
    %v783 = vrot.slane %v779, 3
    %v785 = vadd.f32 %v147, %v783
    %v786 = vxor.u32 %v785, 2147483648
    %v787 = vmul.f32 %v786, 1.442695
    %v788 = vpow.pop %v787
    %v789 = vadd.f32 %v788, 1.0
    %v790 = vrcp.pop %v789
    %v791 = vmul.f32 1.0, %v790
    %v792 = vadd.f32 %v779, %v242
    %v794 = vrot.slane %v792, 3
    %795 = vrot.lane.b32.xlu0 %v794, 64
    %v796 = vpop.permute.xlu0 %795
    %v798 = vmul.f32 %v791, %v796
    %800 = vrot.lane.b32.xlu0 %v798, 64
    %v801 = vpop.permute.xlu0 %800
    %v803 = vadd.f32 %v147, %v801
    %v804 = vtanh.pop %v803
    %v805 = vsub.f32 1.0, %v791
    %807 = vrot.lane.b32.xlu0 %v804, 96
    %v808 = vpop.permute.xlu0 %807
    %v810 = vmul.f32 %v805, %v808
    %v811 = vrot.slane %v705, 7
    %v813 = vmul.f32 %v791, %v811
    %v814 = vadd.f32 %v810, %v813
    %v816 = vrot.slane %v814, 5
    %817 = vrot.lane.b32.xlu0 %v816, 96
    %v818 = vpop.permute.xlu0 %817
    %v819 = vsel %vm76, %v818, 0
    %821 = vmatprep.subr.mxu0 0.0
    %822 = vmatpush1.msra.mxu0 %v150
    %823 = vmatprep.subr.mxu0 0.0
    %824 = vmatpush1.msra.mxu0 %v151
    %825 = vmatprep.subr.mxu0 0.0
    %826 = vmatpush1.msra.mxu0 %v152
    %827 = vmatprep.subr.mxu0 0.0
    %828 = vmatpush1.msra.mxu0 %v153
    %829 = vmatprep.subr.mxu0 0.0
    %830 = vmatpush1.msra.mxu0 0.0
    %831 = vmatprep.subr.mxu0 0.0
    %832 = vmatpush1.msra.mxu0 0.0
    %833 = vmatprep.subr.mxu0 0.0
    %834 = vmatpush1.msra.mxu0 0.0
    %835 = vmatprep.subr.mxu0 0.0
    %836 = vmatpush1.msra.mxu0 0.0
    %837 = vmatprep.subr.mxu0 0.0
    %838 = vmatpush1.msra.mxu0 0.0
    %839 = vmatprep.subr.mxu0 0.0
    %840 = vmatpush1.msra.mxu0 0.0
    %841 = vmatprep.subr.mxu0 0.0
    %842 = vmatpush1.msra.mxu0 0.0
    %843 = vmatprep.subr.mxu0 0.0
    %844 = vmatpush1.msra.mxu0 0.0
    %845 = vmatprep.subr.mxu0 0.0
    %846 = vmatpush1.msra.mxu0 0.0
    %847 = vmatprep.subr.mxu0 0.0
    %848 = vmatpush1.msra.mxu0 0.0
    %849 = vmatprep.subr.mxu0 0.0
    %850 = vmatpush1.msra.mxu0 0.0
    %851 = vmatprep.subr.mxu0 0.0
    %852 = vmatpush1.msra.mxu0 0.0
    %853 = vmatprep.subr.mxu0 0.0
    %854 = vmatpush1.msra.mxu0 0.0
    %855 = vmatprep.subr.mxu0 0.0
    %856 = vmatpush1.msra.mxu0 0.0
    %857 = vmatprep.subr.mxu0 0.0
    %858 = vmatpush1.msra.mxu0 0.0
    %859 = vmatprep.subr.mxu0 0.0
    %860 = vmatpush1.msra.mxu0 0.0
    %861 = vmatprep.subr.mxu0 0.0
    %862 = vmatpush1.msra.mxu0 0.0
    %863 = vmatprep.subr.mxu0 0.0
    %864 = vmatpush1.msra.mxu0 0.0
    %865 = vmatprep.subr.mxu0 0.0
    %866 = vmatpush1.msra.mxu0 0.0
    %867 = vmatprep.subr.mxu0 0.0
    %868 = vmatpush1.msra.mxu0 0.0
    %869 = vmatprep.subr.mxu0 0.0
    %870 = vmatpush1.msra.mxu0 0.0
    %871 = vmatprep.subr.mxu0 0.0
    %872 = vmatpush1.msra.mxu0 0.0
    %873 = vmatprep.subr.mxu0 0.0
    %874 = vmatpush1.msra.mxu0 0.0
    %875 = vmatprep.subr.mxu0 0.0
    %876 = vmatpush1.msra.mxu0 0.0
    %877 = vmatprep.subr.mxu0 0.0
    %878 = vmatpush1.msra.mxu0 0.0
    %879 = vmatprep.subr.mxu0 0.0
    %880 = vmatpush1.msra.mxu0 0.0
    %881 = vmatprep.subr.mxu0 0.0
    %882 = vmatpush1.msra.mxu0 0.0
    %883 = vmatprep.subr.mxu0 0.0
    %884 = vmatpush1.msra.mxu0 0.0
    %885 = vmatprep.mubr.f32.mxu0 0.0
    %886 = vmatmul.mubr.f32.gmra.mrb[0].mxu0 %v819
    %v887 = vpop.f32.mrb[0].mxu0
    %v888 = vadd.f32 0.0, %v887
    %v889 = vpop.f32.mrb[0].mxu0
    %890 = vdwg.mxu0
    %v892 = vrot.slane %v888, 2
    %v894 = vadd.f32 %v147, %v892
    %v895 = vxor.u32 %v894, 2147483648
    %v896 = vmul.f32 %v895, 1.442695
    %v897 = vpow.pop %v896
    %v898 = vadd.f32 %v897, 1.0
    %v899 = vrcp.pop %v898
    %v900 = vmul.f32 1.0, %v899
    %v901 = vadd.f32 %v888, %v242
    %v903 = vrot.slane %v901, 2
    %904 = vrot.lane.b32.xlu0 %v903, 64
    %v905 = vpop.permute.xlu0 %904
    %v907 = vmul.f32 %v900, %v905
    %909 = vrot.lane.b32.xlu0 %v907, 64
    %v910 = vpop.permute.xlu0 %909
    %v912 = vadd.f32 %v147, %v910
    %v913 = vtanh.pop %v912
    %v914 = vsub.f32 1.0, %v900
    %916 = vrot.lane.b32.xlu0 %v913, 96
    %v917 = vpop.permute.xlu0 %916
    %v919 = vmul.f32 %v914, %v917
    %v920 = vrot.slane %v814, 7
    %v922 = vmul.f32 %v900, %v920
    %v923 = vadd.f32 %v919, %v922
    %v925 = vrot.slane %v923, 6
    %926 = vrot.lane.b32.xlu0 %v925, 96
    %v927 = vpop.permute.xlu0 %926
    %v928 = vsel %vm76, %v927, 0
    %930 = vmatprep.subr.mxu0 0.0
    %931 = vmatpush1.msra.mxu0 %v150
    %932 = vmatprep.subr.mxu0 0.0
    %933 = vmatpush1.msra.mxu0 %v151
    %934 = vmatprep.subr.mxu0 0.0
    %935 = vmatpush1.msra.mxu0 %v152
    %936 = vmatprep.subr.mxu0 0.0
    %937 = vmatpush1.msra.mxu0 %v153
    %938 = vmatprep.subr.mxu0 0.0
    %939 = vmatpush1.msra.mxu0 0.0
    %940 = vmatprep.subr.mxu0 0.0
    %941 = vmatpush1.msra.mxu0 0.0
    %942 = vmatprep.subr.mxu0 0.0
    %943 = vmatpush1.msra.mxu0 0.0
    %944 = vmatprep.subr.mxu0 0.0
    %945 = vmatpush1.msra.mxu0 0.0
    %946 = vmatprep.subr.mxu0 0.0
    %947 = vmatpush1.msra.mxu0 0.0
    %948 = vmatprep.subr.mxu0 0.0
    %949 = vmatpush1.msra.mxu0 0.0
    %950 = vmatprep.subr.mxu0 0.0
    %951 = vmatpush1.msra.mxu0 0.0
    %952 = vmatprep.subr.mxu0 0.0
    %953 = vmatpush1.msra.mxu0 0.0
    %954 = vmatprep.subr.mxu0 0.0
    %955 = vmatpush1.msra.mxu0 0.0
    %956 = vmatprep.subr.mxu0 0.0
    %957 = vmatpush1.msra.mxu0 0.0
    %958 = vmatprep.subr.mxu0 0.0
    %959 = vmatpush1.msra.mxu0 0.0
    %960 = vmatprep.subr.mxu0 0.0
    %961 = vmatpush1.msra.mxu0 0.0
    %962 = vmatprep.subr.mxu0 0.0
    %963 = vmatpush1.msra.mxu0 0.0
    %964 = vmatprep.subr.mxu0 0.0
    %965 = vmatpush1.msra.mxu0 0.0
    %966 = vmatprep.subr.mxu0 0.0
    %967 = vmatpush1.msra.mxu0 0.0
    %968 = vmatprep.subr.mxu0 0.0
    %969 = vmatpush1.msra.mxu0 0.0
    %970 = vmatprep.subr.mxu0 0.0
    %971 = vmatpush1.msra.mxu0 0.0
    %972 = vmatprep.subr.mxu0 0.0
    %973 = vmatpush1.msra.mxu0 0.0
    %974 = vmatprep.subr.mxu0 0.0
    %975 = vmatpush1.msra.mxu0 0.0
    %976 = vmatprep.subr.mxu0 0.0
    %977 = vmatpush1.msra.mxu0 0.0
    %978 = vmatprep.subr.mxu0 0.0
    %979 = vmatpush1.msra.mxu0 0.0
    %980 = vmatprep.subr.mxu0 0.0
    %981 = vmatpush1.msra.mxu0 0.0
    %982 = vmatprep.subr.mxu0 0.0
    %983 = vmatpush1.msra.mxu0 0.0
    %984 = vmatprep.subr.mxu0 0.0
    %985 = vmatpush1.msra.mxu0 0.0
    %986 = vmatprep.subr.mxu0 0.0
    %987 = vmatpush1.msra.mxu0 0.0
    %988 = vmatprep.subr.mxu0 0.0
    %989 = vmatpush1.msra.mxu0 0.0
    %990 = vmatprep.subr.mxu0 0.0
    %991 = vmatpush1.msra.mxu0 0.0
    %992 = vmatprep.subr.mxu0 0.0
    %993 = vmatpush1.msra.mxu0 0.0
    %994 = vmatprep.mubr.f32.mxu0 0.0
    %995 = vmatmul.mubr.f32.gmra.mrb[0].mxu0 %v928
    %v996 = vpop.f32.mrb[0].mxu0
    %v997 = vadd.f32 0.0, %v996
    %v998 = vpop.f32.mrb[0].mxu0
    %999 = vdwg.mxu0
    %v1001 = vrot.slane %v997, 1
    %v1003 = vadd.f32 %v147, %v1001
    %v1004 = vxor.u32 %v1003, 2147483648
    %v1005 = vmul.f32 %v1004, 1.442695
    %v1006 = vpow.pop %v1005
    %v1007 = vadd.f32 %v1006, 1.0
    %v1008 = vrcp.pop %v1007
    %v1009 = vmul.f32 1.0, %v1008
    %v1010 = vadd.f32 %v997, %v242
    %v1012 = vrot.slane %v1010, 1
    %1013 = vrot.lane.b32.xlu0 %v1012, 64
    %v1014 = vpop.permute.xlu0 %1013
    %v1016 = vmul.f32 %v1009, %v1014
    %1018 = vrot.lane.b32.xlu0 %v1016, 64
    %v1019 = vpop.permute.xlu0 %1018
    %v1021 = vadd.f32 %v147, %v1019
    %v1022 = vtanh.pop %v1021
    %v1023 = vsub.f32 1.0, %v1009
    %1025 = vrot.lane.b32.xlu0 %v1022, 96
    %v1026 = vpop.permute.xlu0 %1025
    %v1028 = vmul.f32 %v1023, %v1026
    %v1029 = vrot.slane %v923, 7
    %v1031 = vmul.f32 %v1009, %v1029
    %v1032 = vadd.f32 %v1028, %v1031
    %vm1033 = vcmask 1040384
    %v1034 = vsel %vm1033, %v270, %v378
    %vm1035 = vcmask 1041408
    %v1036 = vsel %vm1035, %v1034, %v487
    %vm1037 = vcmask 1042432
    %v1038 = vsel %vm1037, %v1036, %v596
    %vm1039 = vcmask 1043456
    %v1040 = vsel %vm1039, %v1038, %v705
    %vm1041 = vcmask 1044480
    %v1042 = vsel %vm1041, %v1040, %v814
    %vm1043 = vcmask 1045504
    %v1044 = vsel %vm1043, %v1042, %v923
    %vm1045 = vcmask 1046528
    %v1046 = vsel %vm1045, %v1044, %v1032
    %1048 = vrot.lane.b32.xlu0 %v1046, 96
    %v1049 = vpop.permute.xlu0 %1048
    %1051 = vst.msk [vmem:[#allocation5] sm:$0xff] %vm76, %v1049
    // Predicated region
    $region26: #{tpu_custom_call.1} parent=1 // pred_check
      _
    $region27: #{tpu_custom_call.1} parent=1 // pred_check_branch
      %1053 = sbr.rel (0) target = $region29
    $region28: #{tpu_custom_call.1} parent=1 // pred_region
      %s1055 = ssub.s32 128, 128
      %1056 = vsyncadd [#allocation6], %s1055
      %s1058 = sshll.u32 [#allocation5], 4
      %s1059 = int_to_ptr.vmem [resolvable:$true] %s1058
      %1061 = dma.vmem_to_hbm [thread:$0]  %s1059, 128, %s7, [#allocation6]
    $region29: #{tpu_custom_call.1} parent=1 // pred_fallthru
      _
    // Predicated region
    $region30: #{tpu_custom_call.1} parent=1 // pred_check
      _
    $region31: #{tpu_custom_call.1} parent=1 // pred_check_branch
      %1063 = sbr.rel (0) target = $region33
    $region32: #{tpu_custom_call.1} parent=1 // pred_region
      %1064 = dma.done [#allocation6], 128
    $region33: #{tpu_custom_call.1} parent=1 // pred_fallthru
      _
    %1065 = vsyncpa [#allocation6], 1

</llo_original>
